<compile_context>
chip_gen: v5e
topology: v5e:2x2
jax: 0.10.0
libtpu: 0.0.40
codegen_flags: <defaults>
</compile_context>

<pallas_src>
import math
import jax
import jax.numpy as jnp
from jax.experimental import pallas as pl
from jax.experimental.pallas import tpu as pltpu

# ---- scaled-down RoBERTa config -------------------------------------------------
HIDDEN = 128
N_HEADS = 4
HEAD_DIM = HIDDEN // N_HEADS
INTERMEDIATE = 256
N_LAYERS = 2
VOCAB = 100
MAX_POS = 32
LN_EPS = 1e-5
PAD_IDX = 1            # roberta padding_idx
MASK_BIAS = -10000.0


# ---- in-kernel helpers -----------------------------------------------------------
def _layer_norm(x, g, b, eps=LN_EPS):
    mu = jnp.mean(x, axis=-1, keepdims=True)
    var = jnp.mean((x - mu) ** 2, axis=-1, keepdims=True)
    return (x - mu) * jax.lax.rsqrt(var + eps) * g + b


def _gelu(x):
    # TODO(synk): HF RoBERTa uses exact erf-GELU; tanh approximation kept here
    # because erf lowering in Mosaic is not guaranteed on all chips.
    c = math.sqrt(2.0 / math.pi)
    return 0.5 * x * (1.0 + jnp.tanh(c * (x + 0.044715 * x * x * x)))


# ---- fused Pallas kernel ---------------------------------------------------------
def _make_kernel(S, sel_idx):
    H, D, NH = HIDDEN, HEAD_DIM, N_HEADS

    def kernel(emb_ref, kbias_ref, eg_ref, eb_ref,
               wqkv_ref, bqkv_ref, wo_ref, bo_ref, g1_ref, b1_ref,
               wi_ref, bi_ref, wf_ref, bf_ref, g2_ref, b2_ref,
               wp_ref, bp_ref,
               emb_h_ref, layers_h_ref, pooled_ref,
               hidden_ref, ctx_ref):
        l = pl.program_id(1)

        def pooler(h):
            cls = h[0:1, :]                                    # CLS row, plain sublane slice
            return jnp.tanh(
                jnp.dot(cls.astype(jnp.bfloat16), wp_ref[...],
                        preferred_element_type=jnp.float32) + bp_ref[...])

        # ---- layer 0: embedding LayerNorm, initialize the carried hidden slab ----
        @pl.when(l == 0)
        def _():
            h0 = _layer_norm(emb_ref[0], eg_ref[...], eb_ref[...])
            emb_h_ref[0] = h0
            hidden_ref[...] = h0
            if sel_idx == 0:                                   # static python branch
                pooled_ref[0] = pooler(h0)

        hidden = hidden_ref[...]                               # (S, H) f32
        hb = hidden.astype(jnp.bfloat16)
        kbias = kbias_ref[0]                                   # (1, S) additive key bias

        # ---- fused wide Q/K/V projection: one (S,H) @ (H,3H) matmul ----
        qkv = jnp.dot(hb, wqkv_ref[0],
                      preferred_element_type=jnp.float32) + bqkv_ref[0]   # (S, 3H) f32
        qkv_b = qkv.astype(jnp.bfloat16)

        # ---- per-head attention (scores are (S,S); batches never mix) ----
        for n in range(NH):
            qh = qkv_b[:, n * D:(n + 1) * D]
            kh = qkv_b[:, H + n * D:H + (n + 1) * D]
            vh = qkv_b[:, 2 * H + n * D:2 * H + (n + 1) * D]
            s = jnp.einsum('qd,kd->qk', qh, kh,
                           preferred_element_type=jnp.float32) + kbias    # (S, S)
            m = jnp.max(s, axis=-1, keepdims=True)
            p = jnp.exp(s - m)
            p = p * pl.reciprocal(jnp.sum(p, axis=-1, keepdims=True), approx=True)
            ctx_ref[:, n * D:(n + 1) * D] = jnp.dot(
                p.astype(jnp.bfloat16), vh, preferred_element_type=jnp.float32)

        # ---- single wide output projection on head-concatenated context ----
        attn = jnp.dot(ctx_ref[...].astype(jnp.bfloat16), wo_ref[0],
                       preferred_element_type=jnp.float32) + bo_ref[0]
        h1 = _layer_norm(attn + hidden, g1_ref[0], b1_ref[0])

        inter = _gelu(jnp.dot(h1.astype(jnp.bfloat16), wi_ref[0],
                              preferred_element_type=jnp.float32) + bi_ref[0])
        ff = jnp.dot(inter.astype(jnp.bfloat16), wf_ref[0],
                     preferred_element_type=jnp.float32) + bf_ref[0]
        new_hidden = _layer_norm(ff + h1, g2_ref[0], b2_ref[0])

        hidden_ref[...] = new_hidden
        layers_h_ref[0, 0] = new_hidden

        # ---- fused pooler at the grid step that produced hidden[sel_idx] ----
        if sel_idx >= 1:                                       # static python branch
            @pl.when(l == sel_idx - 1)
            def _():
                pooled_ref[0] = pooler(new_hidden)

    return kernel


# ---- wrapper ---------------------------------------------------------------------
def run_fused_encoder(emb, key_bias, packed, sel_idx):
    B, S, H = emb.shape
    L, I = N_LAYERS, INTERMEDIATE

    ins = (emb, key_bias,
           packed['emb_ln_g'], packed['emb_ln_b'],
           packed['wqkv'], packed['bqkv'], packed['wo'], packed['bo'],
           packed['g1'], packed['b1'], packed['wi'], packed['bi'],
           packed['wf'], packed['bf'], packed['g2'], packed['b2'],
           packed['pooler_w'], packed['pooler_b'])

    in_specs = [
        pl.BlockSpec((1, S, H), lambda b, l: (b, 0, 0)),             # emb
        pl.BlockSpec((1, 1, S), lambda b, l: (b, 0, 0)),             # key-padding bias
        pl.BlockSpec((1, H), lambda b, l: (0, 0)),                   # emb LN gamma
        pl.BlockSpec((1, H), lambda b, l: (0, 0)),                   # emb LN beta
        pl.BlockSpec((1, H, 3 * H), lambda b, l: (l, 0, 0)),         # wqkv (streamed)
        pl.BlockSpec((1, 1, 3 * H), lambda b, l: (l, 0, 0)),         # bqkv
        pl.BlockSpec((1, H, H), lambda b, l: (l, 0, 0)),             # wo
        pl.BlockSpec((1, 1, H), lambda b, l: (l, 0, 0)),             # bo
        pl.BlockSpec((1, 1, H), lambda b, l: (l, 0, 0)),             # LN1 gamma
        pl.BlockSpec((1, 1, H), lambda b, l: (l, 0, 0)),             # LN1 beta
        pl.BlockSpec((1, H, I), lambda b, l: (l, 0, 0)),             # wi
        pl.BlockSpec((1, 1, I), lambda b, l: (l, 0, 0)),             # bi
        pl.BlockSpec((1, I, H), lambda b, l: (l, 0, 0)),             # wf
        pl.BlockSpec((1, 1, H), lambda b, l: (l, 0, 0)),             # bf
        pl.BlockSpec((1, 1, H), lambda b, l: (l, 0, 0)),             # LN2 gamma
        pl.BlockSpec((1, 1, H), lambda b, l: (l, 0, 0)),             # LN2 beta
        pl.BlockSpec((H, H), lambda b, l: (0, 0)),                   # pooler W
        pl.BlockSpec((1, H), lambda b, l: (0, 0)),                   # pooler b
    ]
    out_specs = (
        pl.BlockSpec((1, S, H), lambda b, l: (b, 0, 0)),             # embedding hidden
        pl.BlockSpec((1, 1, S, H), lambda b, l: (l, b, 0, 0)),       # per-layer hidden
        pl.BlockSpec((1, 1, H), lambda b, l: (b, 0, 0)),             # pooled (B,1,H)
    )
    out_shapes = (
        jax.ShapeDtypeStruct((B, S, H), jnp.float32),
        jax.ShapeDtypeStruct((L, B, S, H), jnp.float32),
        jax.ShapeDtypeStruct((B, 1, H), jnp.float32),
    )

    # advisory cost estimate for XLA scheduling around the embedding gathers
    flops_layer = (2 * S * H * 3 * H + N_HEADS * 4 * S * S * HEAD_DIM
                   + 2 * S * H * H + 2 * S * H * I + 2 * S * I * H)
    flops = B * (L * flops_layer + 2 * H * H)
    transc = B * (L * (N_HEADS * S * S + S * I + 6 * S) + H)
    in_bytes = sum(int(x.size) * int(x.dtype.itemsize) for x in ins)
    out_bytes = (B * S * H + L * B * S * H + B * H) * 4
    cost = pl.CostEstimate(flops=int(flops), transcendentals=int(transc),
                           bytes_accessed=int(in_bytes + out_bytes))

    emb_h, layers_h, pooled = pl.pallas_call(
        _make_kernel(S, sel_idx),
        out_shape=out_shapes,
        grid=(B, L),
        in_specs=in_specs,
        out_specs=out_specs,
        scratch_shapes=[pltpu.VMEM((S, H), jnp.float32),    # carried hidden state
                        pltpu.VMEM((S, H), jnp.float32)],   # head-concat context
        compiler_params=pltpu.CompilerParams(
            dimension_semantics=("parallel", "arbitrary"),
            vmem_limit_bytes=32 * 1024 * 1024),
        cost_estimate=cost,
    )(*ins)
    return pooled.reshape(B, H), emb_h, layers_h


# ---- parameter init (deterministic, synthetic) -------------------------------------
def init_params(key):
    def dense(k, shape):
        return 0.02 * jax.random.normal(k, shape, jnp.float32)

    keys = iter(jax.random.split(key, 8 + 8 * N_LAYERS))
    params = {
        "word_emb": dense(next(keys), (VOCAB, HIDDEN)),
        "pos_emb": dense(next(keys), (MAX_POS, HIDDEN)),
        "type_emb": dense(next(keys), (2, HIDDEN)),
        "emb_ln_g": jnp.ones((1, HIDDEN), jnp.float32),
        "emb_ln_b": jnp.zeros((1, HIDDEN), jnp.float32),
        "pooler_w": dense(next(keys), (HIDDEN, HIDDEN)),
        "pooler_b": jnp.zeros((1, HIDDEN), jnp.float32),
    }
    layers = []
    for _ in range(N_LAYERS):
        lp = [
            dense(next(keys), (HIDDEN, HIDDEN)), jnp.zeros((1, HIDDEN), jnp.float32),  # q
            dense(next(keys), (HIDDEN, HIDDEN)), jnp.zeros((1, HIDDEN), jnp.float32),  # k
            dense(next(keys), (HIDDEN, HIDDEN)), jnp.zeros((1, HIDDEN), jnp.float32),  # v
            dense(next(keys), (HIDDEN, HIDDEN)), jnp.zeros((1, HIDDEN), jnp.float32),  # attn out
            jnp.ones((1, HIDDEN), jnp.float32), jnp.zeros((1, HIDDEN), jnp.float32),   # LN1
            dense(next(keys), (HIDDEN, INTERMEDIATE)), jnp.zeros((1, INTERMEDIATE), jnp.float32),
            dense(next(keys), (INTERMEDIATE, HIDDEN)), jnp.zeros((1, HIDDEN), jnp.float32),
            jnp.ones((1, HIDDEN), jnp.float32), jnp.zeros((1, HIDDEN), jnp.float32),   # LN2
        ]
        layers.append(lp)
    params["layers"] = layers
    return params


def pack_params(params):
    """Stack per-layer weights on a leading layer axis (streamed via BlockSpec).

    Q|K|V are fused into one (H, 3H) matrix with the 1/sqrt(D) attention scale
    folded into Wq/bq.  Matmul weights are cast to bf16 (f32 accumulation in
    the kernel); biases and LayerNorm params stay f32.
    """
    scale = 1.0 / math.sqrt(HEAD_DIM)
    acc = {k: [] for k in ('wqkv', 'bqkv', 'wo', 'bo', 'g1', 'b1',
                           'wi', 'bi', 'wf', 'bf', 'g2', 'b2')}
    for lp in params['layers']:
        (wq, bq, wk, bk, wv, bv, wo, bo,
         g1, b1, wi, bi, wf, bf, g2, b2) = lp
        acc['wqkv'].append(jnp.concatenate([wq * scale, wk, wv], axis=1))   # (H, 3H)
        acc['bqkv'].append(jnp.concatenate([bq * scale, bk, bv], axis=1))   # (1, 3H)
        acc['wo'].append(wo)
        acc['bo'].append(bo)
        acc['g1'].append(g1); acc['b1'].append(b1)
        acc['wi'].append(wi); acc['bi'].append(bi)
        acc['wf'].append(wf); acc['bf'].append(bf)
        acc['g2'].append(g2); acc['b2'].append(b2)

    packed = {k: jnp.stack(v) for k, v in acc.items()}
    for k in ('wqkv', 'wo', 'wi', 'wf'):
        packed[k] = packed[k].astype(jnp.bfloat16)
    packed.update({
        'emb_ln_g': params['emb_ln_g'], 'emb_ln_b': params['emb_ln_b'],
        'pooler_w': params['pooler_w'].astype(jnp.bfloat16),
        'pooler_b': params['pooler_b'],
    })
    return packed


# ---- forward (mirrors AristoEncoder.forward) ---------------------------------------
def aristo_encoder_forward(params, input_ids, attention_mask, layer_id=-1):
    input_ids = input_ids.astype(jnp.int32)
    attention_mask = attention_mask.astype(jnp.float32)
    B, S = input_ids.shape

    # roberta position ids: cumsum over non-pad tokens, offset by padding_idx
    ne = (input_ids != PAD_IDX).astype(jnp.int32)
    position_ids = jnp.cumsum(ne, axis=1) * ne + PAD_IDX

    # embedding gathers are XLA glue; LayerNorm runs inside the fused kernel
    emb = (jnp.take(params["word_emb"], input_ids, axis=0)
           + jnp.take(params["pos_emb"], position_ids, axis=0)
           + params["type_emb"][0][None, None, :]).astype(jnp.float32)

    # tiny per-batch additive key-padding bias (B, 1, S): 0 where allowed, -1e4 else
    key_bias = ((1.0 - attention_mask) * MASK_BIAS).reshape(B, 1, S).astype(jnp.float32)

    sel_idx = layer_id % (N_LAYERS + 1)       # index into all_hidden_states (static)
    packed = pack_params(params)
    sent_vecs, emb_h, layers_h = run_fused_encoder(emb, key_bias, packed, sel_idx)
    all_hidden_states = (emb_h,) + tuple(layers_h[i] for i in range(N_LAYERS))
    return sent_vecs, all_hidden_states


if __name__ == "__main__":
    key = jax.random.PRNGKey(0)
    pkey, ikey = jax.random.split(key)
    params = init_params(pkey)

    B, S = 2, 8
    input_ids = jax.random.randint(ikey, (B, S), 2, VOCAB).astype(jnp.int32)
    attention_mask = jnp.ones((B, S), jnp.int32)
    # pad the tail of the second sequence to exercise the attention mask
    input_ids = input_ids.at[1, 5:].set(PAD_IDX)
    attention_mask = attention_mask.at[1, 5:].set(0)

    sent_vecs, all_hidden_states = aristo_encoder_forward(
        params, input_ids, attention_mask, layer_id=-1)
    jax.block_until_ready(sent_vecs)
    jax.block_until_ready(all_hidden_states)

    assert sent_vecs.shape == (B, HIDDEN)
    assert len(all_hidden_states) == N_LAYERS + 1
    assert all(h.shape == (B, S, HIDDEN) for h in all_hidden_states)
    assert bool(jnp.all(jnp.isfinite(sent_vecs)))
    assert all(bool(jnp.all(jnp.isfinite(h))) for h in all_hidden_states)
    print("KERNEL_OK")
</pallas_src>

<mosaic_0001>
module attributes {stable_mosaic.version = 11 : i64} {
  func.func @kernel(%arg0: i32, %arg1: i32, %arg2: memref<1x8x128xf32, #tpu.memory_space<vmem>>, %arg3: memref<1x1x8xf32, #tpu.memory_space<vmem>>, %arg4: memref<1x128xf32, #tpu.memory_space<vmem>>, %arg5: memref<1x128xf32, #tpu.memory_space<vmem>>, %arg6: memref<1x128x384xbf16, #tpu.memory_space<vmem>>, %arg7: memref<1x1x384xf32, #tpu.memory_space<vmem>>, %arg8: memref<1x128x128xbf16, #tpu.memory_space<vmem>>, %arg9: memref<1x1x128xf32, #tpu.memory_space<vmem>>, %arg10: memref<1x1x128xf32, #tpu.memory_space<vmem>>, %arg11: memref<1x1x128xf32, #tpu.memory_space<vmem>>, %arg12: memref<1x128x256xbf16, #tpu.memory_space<vmem>>, %arg13: memref<1x1x256xf32, #tpu.memory_space<vmem>>, %arg14: memref<1x256x128xbf16, #tpu.memory_space<vmem>>, %arg15: memref<1x1x128xf32, #tpu.memory_space<vmem>>, %arg16: memref<1x1x128xf32, #tpu.memory_space<vmem>>, %arg17: memref<1x1x128xf32, #tpu.memory_space<vmem>>, %arg18: memref<128x128xbf16, #tpu.memory_space<vmem>>, %arg19: memref<1x128xf32, #tpu.memory_space<vmem>>, %arg20: memref<1x8x128xf32, #tpu.memory_space<vmem>>, %arg21: memref<1x1x8x128xf32, #tpu.memory_space<vmem>>, %arg22: memref<1x1x128xf32, #tpu.memory_space<vmem>>, %arg23: memref<8x128xf32, #tpu.memory_space<vmem>>, %arg24: memref<8x128xf32, #tpu.memory_space<vmem>>) attributes {dimension_semantics = [#tpu.dimension_semantics<parallel>, #tpu.dimension_semantics<arbitrary>], iteration_bounds = array<i64: 2, 2>, scalar_prefetch = 0 : i64, scratch_operands = 2 : i64, tpu.core_type = #tpu.core_type<tc>, window_params = [{transform_indices = @transform_0, window_bounds = array<i64: 1, 8, 128>}, {transform_indices = @transform_1, window_bounds = array<i64: 1, 1, 8>}, {pipeline_mode = #tpu.pipeline_mode<synchronous>, transform_indices = @transform_2, window_bounds = array<i64: 1, 128>}, {pipeline_mode = #tpu.pipeline_mode<synchronous>, transform_indices = @transform_3, window_bounds = array<i64: 1, 128>}, {transform_indices = @transform_4, window_bounds = array<i64: 1, 128, 384>}, {transform_indices = @transform_5, window_bounds = array<i64: 1, 1, 384>}, {transform_indices = @transform_6, window_bounds = array<i64: 1, 128, 128>}, {transform_indices = @transform_7, window_bounds = array<i64: 1, 1, 128>}, {transform_indices = @transform_8, window_bounds = array<i64: 1, 1, 128>}, {transform_indices = @transform_9, window_bounds = array<i64: 1, 1, 128>}, {transform_indices = @transform_10, window_bounds = array<i64: 1, 128, 256>}, {transform_indices = @transform_11, window_bounds = array<i64: 1, 1, 256>}, {transform_indices = @transform_12, window_bounds = array<i64: 1, 256, 128>}, {transform_indices = @transform_13, window_bounds = array<i64: 1, 1, 128>}, {transform_indices = @transform_14, window_bounds = array<i64: 1, 1, 128>}, {transform_indices = @transform_15, window_bounds = array<i64: 1, 1, 128>}, {pipeline_mode = #tpu.pipeline_mode<synchronous>, transform_indices = @transform_16, window_bounds = array<i64: 128, 128>}, {pipeline_mode = #tpu.pipeline_mode<synchronous>, transform_indices = @transform_17, window_bounds = array<i64: 1, 128>}, {transform_indices = @transform_18, window_bounds = array<i64: 1, 8, 128>}, {transform_indices = @transform_19, window_bounds = array<i64: 1, 1, 8, 128>}, {transform_indices = @transform_20, window_bounds = array<i64: 1, 1, 128>}]} {
    %c0_i32 = arith.constant 0 : i32
    %0 = arith.cmpi eq, %arg1, %c0_i32 : i32
    %1 = arith.extui %0 : i1 to i32
    %c0_i32_0 = arith.constant 0 : i32
    %2 = arith.cmpi ne, %1, %c0_i32_0 : i32
    scf.if %2 {
      %c0_88 = arith.constant 0 : index
      %c0_89 = arith.constant 0 : index
      %c0_90 = arith.constant 0 : index
      %190 = vector.load %arg2[%c0_88, %c0_89, %c0_90] : memref<1x8x128xf32, #tpu.memory_space<vmem>>, vector<1x8x128xf32>
      %191 = vector.shape_cast %190 : vector<1x8x128xf32> to vector<8x128xf32>
      %c0_91 = arith.constant 0 : index
      %c0_92 = arith.constant 0 : index
      %192 = vector.load %arg4[%c0_91, %c0_92] : memref<1x128xf32, #tpu.memory_space<vmem>>, vector<1x128xf32>
      %c0_93 = arith.constant 0 : index
      %c0_94 = arith.constant 0 : index
      %193 = vector.load %arg5[%c0_93, %c0_94] : memref<1x128xf32, #tpu.memory_space<vmem>>, vector<1x128xf32>
      %cst_95 = arith.constant dense<0.000000e+00> : vector<8xf32>
      %194 = vector.multi_reduction <add>, %191, %cst_95 [1] : vector<8x128xf32> to vector<8xf32>
      %195 = vector.shape_cast %194 : vector<8xf32> to vector<8x1xf32>
      %cst_96 = arith.constant 1.280000e+02 : f32
      %196 = vector.broadcast %cst_96 : f32 to vector<8x1xf32>
      %197 = arith.divf %195, %196 : vector<8x1xf32>
      %198 = vector.broadcast %197 : vector<8x1xf32> to vector<8x128xf32>
      %199 = arith.subf %191, %198 : vector<8x128xf32>
      %200 = arith.mulf %199, %199 : vector<8x128xf32>
      %cst_97 = arith.constant dense<0.000000e+00> : vector<8xf32>
      %201 = vector.multi_reduction <add>, %200, %cst_97 [1] : vector<8x128xf32> to vector<8xf32>
      %202 = vector.shape_cast %201 : vector<8xf32> to vector<8x1xf32>
      %cst_98 = arith.constant 1.280000e+02 : f32
      %203 = vector.broadcast %cst_98 : f32 to vector<8x1xf32>
      %204 = arith.divf %202, %203 : vector<8x1xf32>
      %205 = vector.broadcast %197 : vector<8x1xf32> to vector<8x128xf32>
      %206 = arith.subf %191, %205 : vector<8x128xf32>
      %cst_99 = arith.constant 9.99999974E-6 : f32
      %207 = vector.broadcast %cst_99 : f32 to vector<8x1xf32>
      %208 = arith.addf %204, %207 : vector<8x1xf32>
      %209 = math.rsqrt %208 : vector<8x1xf32>
      %210 = vector.broadcast %209 : vector<8x1xf32> to vector<8x128xf32>
      %211 = arith.mulf %206, %210 : vector<8x128xf32>
      %212 = vector.broadcast %192 : vector<1x128xf32> to vector<8x128xf32>
      %213 = arith.mulf %211, %212 : vector<8x128xf32>
      %214 = vector.broadcast %193 : vector<1x128xf32> to vector<8x128xf32>
      %215 = arith.addf %213, %214 : vector<8x128xf32>
      %c0_100 = arith.constant 0 : index
      %c0_101 = arith.constant 0 : index
      %c0_102 = arith.constant 0 : index
      %216 = vector.load %arg20[%c0_100, %c0_101, %c0_102] : memref<1x8x128xf32, #tpu.memory_space<vmem>>, vector<1x8x128xf32>
      %217 = vector.shape_cast %216 : vector<1x8x128xf32> to vector<8x128xf32>
      %218 = vector.shape_cast %215 : vector<8x128xf32> to vector<1x8x128xf32>
      tpu.vector_store %arg20[%c0_100, %c0_101, %c0_102], %218 {strides = array<i32>} : memref<1x8x128xf32, #tpu.memory_space<vmem>>, vector<1x8x128xf32>,
      %c0_103 = arith.constant 0 : index
      %c0_104 = arith.constant 0 : index
      %219 = vector.load %arg23[%c0_103, %c0_104] : memref<8x128xf32, #tpu.memory_space<vmem>>, vector<8x128xf32>
      tpu.vector_store %arg23[%c0_103, %c0_104], %215 {strides = array<i32>} : memref<8x128xf32, #tpu.memory_space<vmem>>, vector<8x128xf32>,
    } else {
    }
    %c0 = arith.constant 0 : index
    %c0_1 = arith.constant 0 : index
    %3 = vector.load %arg23[%c0, %c0_1] : memref<8x128xf32, #tpu.memory_space<vmem>>, vector<8x128xf32>
    %4 = arith.truncf %3 : vector<8x128xf32> to vector<8x128xbf16>
    %c0_2 = arith.constant 0 : index
    %c0_3 = arith.constant 0 : index
    %c0_4 = arith.constant 0 : index
    %5 = vector.load %arg3[%c0_2, %c0_3, %c0_4] : memref<1x1x8xf32, #tpu.memory_space<vmem>>, vector<1x1x8xf32>
    %6 = vector.shape_cast %5 : vector<1x1x8xf32> to vector<1x8xf32>
    %c0_5 = arith.constant 0 : index
    %c0_6 = arith.constant 0 : index
    %c0_7 = arith.constant 0 : index
    %7 = vector.load %arg6[%c0_5, %c0_6, %c0_7] : memref<1x128x384xbf16, #tpu.memory_space<vmem>>, vector<1x128x384xbf16>
    %8 = vector.shape_cast %7 : vector<1x128x384xbf16> to vector<128x384xbf16>
    %cst = arith.constant dense<0.000000e+00> : vector<8x384xf32>
    %9 = tpu.matmul %4, %8, %cst {dimension_numbers = #tpu.dot_dimension_numbers<[1], [0], [0], [1], [0, 0, 1, 1], [], []>} : vector<8x128xbf16>, vector<128x384xbf16>, vector<8x384xf32> -> vector<8x384xf32>
    %c0_8 = arith.constant 0 : index
    %c0_9 = arith.constant 0 : index
    %c0_10 = arith.constant 0 : index
    %10 = vector.load %arg7[%c0_8, %c0_9, %c0_10] : memref<1x1x384xf32, #tpu.memory_space<vmem>>, vector<1x1x384xf32>
    %11 = vector.shape_cast %10 : vector<1x1x384xf32> to vector<1x384xf32>
    %12 = vector.broadcast %11 : vector<1x384xf32> to vector<8x384xf32>
    %13 = arith.addf %9, %12 : vector<8x384xf32>
    %14 = arith.truncf %13 : vector<8x384xf32> to vector<8x384xbf16>
    %15 = vector.extract_strided_slice %14 {offsets = [0, 0], sizes = [8, 32], strides = [1, 1]} : vector<8x384xbf16> to vector<8x32xbf16>
    %16 = vector.extract_strided_slice %14 {offsets = [0, 128], sizes = [8, 32], strides = [1, 1]} : vector<8x384xbf16> to vector<8x32xbf16>
    %17 = vector.extract_strided_slice %14 {offsets = [0, 256], sizes = [8, 32], strides = [1, 1]} : vector<8x384xbf16> to vector<8x32xbf16>
    "tpu.trace_start"() <{level = 10 : i32, message = "qd,kd->qk"}> : () -> ()
    %cst_11 = arith.constant dense<0.000000e+00> : vector<8x8xf32>
    %18 = tpu.matmul %15, %16, %cst_11 {dimension_numbers = #tpu.dot_dimension_numbers<[1], [1], [0], [0], [0, 0, 1, 0], [], []>} : vector<8x32xbf16>, vector<8x32xbf16>, vector<8x8xf32> -> vector<8x8xf32>
    "tpu.trace_stop"() : () -> ()
    %19 = vector.broadcast %6 : vector<1x8xf32> to vector<8x8xf32>
    %20 = arith.addf %18, %19 : vector<8x8xf32>
    %cst_12 = arith.constant dense<0xFF800000> : vector<8xf32>
    %21 = vector.multi_reduction <maximumf>, %20, %cst_12 [1] : vector<8x8xf32> to vector<8xf32>
    %22 = vector.shape_cast %21 : vector<8xf32> to vector<8x1xf32>
    %23 = vector.broadcast %22 : vector<8x1xf32> to vector<8x8xf32>
    %24 = arith.subf %20, %23 : vector<8x8xf32>
    %25 = math.exp %24 : vector<8x8xf32>
    %cst_13 = arith.constant dense<0.000000e+00> : vector<8xf32>
    %26 = vector.multi_reduction <add>, %25, %cst_13 [1] : vector<8x8xf32> to vector<8xf32>
    %27 = vector.shape_cast %26 : vector<8xf32> to vector<8x1xf32>
    %28 = tpu.reciprocal %27 {approx = true} : vector<8x1xf32> -> vector<8x1xf32>
    %29 = vector.broadcast %28 : vector<8x1xf32> to vector<8x8xf32>
    %30 = arith.mulf %25, %29 : vector<8x8xf32>
    %31 = arith.truncf %30 : vector<8x8xf32> to vector<8x8xbf16>
    %cst_14 = arith.constant dense<0.000000e+00> : vector<8x32xf32>
    %32 = tpu.matmul %31, %17, %cst_14 {dimension_numbers = #tpu.dot_dimension_numbers<[1], [0], [0], [1], [0, 0, 1, 1], [], []>} : vector<8x8xbf16>, vector<8x32xbf16>, vector<8x32xf32> -> vector<8x32xf32>
    %c0_15 = arith.constant 0 : index
    %c0_16 = arith.constant 0 : index
    %33 = vector.load %arg24[%c0_15, %c0_16] : memref<8x128xf32, #tpu.memory_space<vmem>>, vector<8x32xf32>
    tpu.vector_store %arg24[%c0_15, %c0_16], %32 {strides = array<i32>} : memref<8x128xf32, #tpu.memory_space<vmem>>, vector<8x32xf32>,
    %34 = vector.extract_strided_slice %14 {offsets = [0, 32], sizes = [8, 32], strides = [1, 1]} : vector<8x384xbf16> to vector<8x32xbf16>
    %35 = vector.extract_strided_slice %14 {offsets = [0, 160], sizes = [8, 32], strides = [1, 1]} : vector<8x384xbf16> to vector<8x32xbf16>
    %36 = vector.extract_strided_slice %14 {offsets = [0, 288], sizes = [8, 32], strides = [1, 1]} : vector<8x384xbf16> to vector<8x32xbf16>
    "tpu.trace_start"() <{level = 10 : i32, message = "qd,kd->qk"}> : () -> ()
    %cst_17 = arith.constant dense<0.000000e+00> : vector<8x8xf32>
    %37 = tpu.matmul %34, %35, %cst_17 {dimension_numbers = #tpu.dot_dimension_numbers<[1], [1], [0], [0], [0, 0, 1, 0], [], []>} : vector<8x32xbf16>, vector<8x32xbf16>, vector<8x8xf32> -> vector<8x8xf32>
    "tpu.trace_stop"() : () -> ()
    %38 = vector.broadcast %6 : vector<1x8xf32> to vector<8x8xf32>
    %39 = arith.addf %37, %38 : vector<8x8xf32>
    %cst_18 = arith.constant dense<0xFF800000> : vector<8xf32>
    %40 = vector.multi_reduction <maximumf>, %39, %cst_18 [1] : vector<8x8xf32> to vector<8xf32>
    %41 = vector.shape_cast %40 : vector<8xf32> to vector<8x1xf32>
    %42 = vector.broadcast %41 : vector<8x1xf32> to vector<8x8xf32>
    %43 = arith.subf %39, %42 : vector<8x8xf32>
    %44 = math.exp %43 : vector<8x8xf32>
    %cst_19 = arith.constant dense<0.000000e+00> : vector<8xf32>
    %45 = vector.multi_reduction <add>, %44, %cst_19 [1] : vector<8x8xf32> to vector<8xf32>
    %46 = vector.shape_cast %45 : vector<8xf32> to vector<8x1xf32>
    %47 = tpu.reciprocal %46 {approx = true} : vector<8x1xf32> -> vector<8x1xf32>
    %48 = vector.broadcast %47 : vector<8x1xf32> to vector<8x8xf32>
    %49 = arith.mulf %44, %48 : vector<8x8xf32>
    %50 = arith.truncf %49 : vector<8x8xf32> to vector<8x8xbf16>
    %cst_20 = arith.constant dense<0.000000e+00> : vector<8x32xf32>
    %51 = tpu.matmul %50, %36, %cst_20 {dimension_numbers = #tpu.dot_dimension_numbers<[1], [0], [0], [1], [0, 0, 1, 1], [], []>} : vector<8x8xbf16>, vector<8x32xbf16>, vector<8x32xf32> -> vector<8x32xf32>
    %c0_21 = arith.constant 0 : index
    %c32 = arith.constant 32 : index
    %52 = vector.load %arg24[%c0_21, %c32] : memref<8x128xf32, #tpu.memory_space<vmem>>, vector<8x32xf32>
    tpu.vector_store %arg24[%c0_21, %c32], %51 {strides = array<i32>} : memref<8x128xf32, #tpu.memory_space<vmem>>, vector<8x32xf32>,
    %53 = vector.extract_strided_slice %14 {offsets = [0, 64], sizes = [8, 32], strides = [1, 1]} : vector<8x384xbf16> to vector<8x32xbf16>
    %54 = vector.extract_strided_slice %14 {offsets = [0, 192], sizes = [8, 32], strides = [1, 1]} : vector<8x384xbf16> to vector<8x32xbf16>
    %55 = vector.extract_strided_slice %14 {offsets = [0, 320], sizes = [8, 32], strides = [1, 1]} : vector<8x384xbf16> to vector<8x32xbf16>
    "tpu.trace_start"() <{level = 10 : i32, message = "qd,kd->qk"}> : () -> ()
    %cst_22 = arith.constant dense<0.000000e+00> : vector<8x8xf32>
    %56 = tpu.matmul %53, %54, %cst_22 {dimension_numbers = #tpu.dot_dimension_numbers<[1], [1], [0], [0], [0, 0, 1, 0], [], []>} : vector<8x32xbf16>, vector<8x32xbf16>, vector<8x8xf32> -> vector<8x8xf32>
    "tpu.trace_stop"() : () -> ()
    %57 = vector.broadcast %6 : vector<1x8xf32> to vector<8x8xf32>
    %58 = arith.addf %56, %57 : vector<8x8xf32>
    %cst_23 = arith.constant dense<0xFF800000> : vector<8xf32>
    %59 = vector.multi_reduction <maximumf>, %58, %cst_23 [1] : vector<8x8xf32> to vector<8xf32>
    %60 = vector.shape_cast %59 : vector<8xf32> to vector<8x1xf32>
    %61 = vector.broadcast %60 : vector<8x1xf32> to vector<8x8xf32>
    %62 = arith.subf %58, %61 : vector<8x8xf32>
    %63 = math.exp %62 : vector<8x8xf32>
    %cst_24 = arith.constant dense<0.000000e+00> : vector<8xf32>
    %64 = vector.multi_reduction <add>, %63, %cst_24 [1] : vector<8x8xf32> to vector<8xf32>
    %65 = vector.shape_cast %64 : vector<8xf32> to vector<8x1xf32>
    %66 = tpu.reciprocal %65 {approx = true} : vector<8x1xf32> -> vector<8x1xf32>
    %67 = vector.broadcast %66 : vector<8x1xf32> to vector<8x8xf32>
    %68 = arith.mulf %63, %67 : vector<8x8xf32>
    %69 = arith.truncf %68 : vector<8x8xf32> to vector<8x8xbf16>
    %cst_25 = arith.constant dense<0.000000e+00> : vector<8x32xf32>
    %70 = tpu.matmul %69, %55, %cst_25 {dimension_numbers = #tpu.dot_dimension_numbers<[1], [0], [0], [1], [0, 0, 1, 1], [], []>} : vector<8x8xbf16>, vector<8x32xbf16>, vector<8x32xf32> -> vector<8x32xf32>
    %c0_26 = arith.constant 0 : index
    %c64 = arith.constant 64 : index
    %71 = vector.load %arg24[%c0_26, %c64] : memref<8x128xf32, #tpu.memory_space<vmem>>, vector<8x32xf32>
    tpu.vector_store %arg24[%c0_26, %c64], %70 {strides = array<i32>} : memref<8x128xf32, #tpu.memory_space<vmem>>, vector<8x32xf32>,
    %72 = vector.extract_strided_slice %14 {offsets = [0, 96], sizes = [8, 32], strides = [1, 1]} : vector<8x384xbf16> to vector<8x32xbf16>
    %73 = vector.extract_strided_slice %14 {offsets = [0, 224], sizes = [8, 32], strides = [1, 1]} : vector<8x384xbf16> to vector<8x32xbf16>
    %74 = vector.extract_strided_slice %14 {offsets = [0, 352], sizes = [8, 32], strides = [1, 1]} : vector<8x384xbf16> to vector<8x32xbf16>
    "tpu.trace_start"() <{level = 10 : i32, message = "qd,kd->qk"}> : () -> ()
    %cst_27 = arith.constant dense<0.000000e+00> : vector<8x8xf32>
    %75 = tpu.matmul %72, %73, %cst_27 {dimension_numbers = #tpu.dot_dimension_numbers<[1], [1], [0], [0], [0, 0, 1, 0], [], []>} : vector<8x32xbf16>, vector<8x32xbf16>, vector<8x8xf32> -> vector<8x8xf32>
    "tpu.trace_stop"() : () -> ()
    %76 = vector.broadcast %6 : vector<1x8xf32> to vector<8x8xf32>
    %77 = arith.addf %75, %76 : vector<8x8xf32>
    %cst_28 = arith.constant dense<0xFF800000> : vector<8xf32>
    %78 = vector.multi_reduction <maximumf>, %77, %cst_28 [1] : vector<8x8xf32> to vector<8xf32>
    %79 = vector.shape_cast %78 : vector<8xf32> to vector<8x1xf32>
    %80 = vector.broadcast %79 : vector<8x1xf32> to vector<8x8xf32>
    %81 = arith.subf %77, %80 : vector<8x8xf32>
    %82 = math.exp %81 : vector<8x8xf32>
    %cst_29 = arith.constant dense<0.000000e+00> : vector<8xf32>
    %83 = vector.multi_reduction <add>, %82, %cst_29 [1] : vector<8x8xf32> to vector<8xf32>
    %84 = vector.shape_cast %83 : vector<8xf32> to vector<8x1xf32>
    %85 = tpu.reciprocal %84 {approx = true} : vector<8x1xf32> -> vector<8x1xf32>
    %86 = vector.broadcast %85 : vector<8x1xf32> to vector<8x8xf32>
    %87 = arith.mulf %82, %86 : vector<8x8xf32>
    %88 = arith.truncf %87 : vector<8x8xf32> to vector<8x8xbf16>
    %cst_30 = arith.constant dense<0.000000e+00> : vector<8x32xf32>
    %89 = tpu.matmul %88, %74, %cst_30 {dimension_numbers = #tpu.dot_dimension_numbers<[1], [0], [0], [1], [0, 0, 1, 1], [], []>} : vector<8x8xbf16>, vector<8x32xbf16>, vector<8x32xf32> -> vector<8x32xf32>
    %c0_31 = arith.constant 0 : index
    %c96 = arith.constant 96 : index
    %90 = vector.load %arg24[%c0_31, %c96] : memref<8x128xf32, #tpu.memory_space<vmem>>, vector<8x32xf32>
    tpu.vector_store %arg24[%c0_31, %c96], %89 {strides = array<i32>} : memref<8x128xf32, #tpu.memory_space<vmem>>, vector<8x32xf32>,
    %c0_32 = arith.constant 0 : index
    %c0_33 = arith.constant 0 : index
    %91 = vector.load %arg24[%c0_32, %c0_33] : memref<8x128xf32, #tpu.memory_space<vmem>>, vector<8x128xf32>
    %92 = arith.truncf %91 : vector<8x128xf32> to vector<8x128xbf16>
    %c0_34 = arith.constant 0 : index
    %c0_35 = arith.constant 0 : index
    %c0_36 = arith.constant 0 : index
    %93 = vector.load %arg8[%c0_34, %c0_35, %c0_36] : memref<1x128x128xbf16, #tpu.memory_space<vmem>>, vector<1x128x128xbf16>
    %94 = vector.shape_cast %93 : vector<1x128x128xbf16> to vector<128x128xbf16>
    %cst_37 = arith.constant dense<0.000000e+00> : vector<8x128xf32>
    %95 = tpu.matmul %92, %94, %cst_37 {dimension_numbers = #tpu.dot_dimension_numbers<[1], [0], [0], [1], [0, 0, 1, 1], [], []>} : vector<8x128xbf16>, vector<128x128xbf16>, vector<8x128xf32> -> vector<8x128xf32>
    %c0_38 = arith.constant 0 : index
    %c0_39 = arith.constant 0 : index
    %c0_40 = arith.constant 0 : index
    %96 = vector.load %arg9[%c0_38, %c0_39, %c0_40] : memref<1x1x128xf32, #tpu.memory_space<vmem>>, vector<1x1x128xf32>
    %97 = vector.shape_cast %96 : vector<1x1x128xf32> to vector<1x128xf32>
    %98 = vector.broadcast %97 : vector<1x128xf32> to vector<8x128xf32>
    %99 = arith.addf %95, %98 : vector<8x128xf32>
    %100 = arith.addf %99, %3 : vector<8x128xf32>
    %c0_41 = arith.constant 0 : index
    %c0_42 = arith.constant 0 : index
    %c0_43 = arith.constant 0 : index
    %101 = vector.load %arg10[%c0_41, %c0_42, %c0_43] : memref<1x1x128xf32, #tpu.memory_space<vmem>>, vector<1x1x128xf32>
    %102 = vector.shape_cast %101 : vector<1x1x128xf32> to vector<1x128xf32>
    %c0_44 = arith.constant 0 : index
    %c0_45 = arith.constant 0 : index
    %c0_46 = arith.constant 0 : index
    %103 = vector.load %arg11[%c0_44, %c0_45, %c0_46] : memref<1x1x128xf32, #tpu.memory_space<vmem>>, vector<1x1x128xf32>
    %104 = vector.shape_cast %103 : vector<1x1x128xf32> to vector<1x128xf32>
    %cst_47 = arith.constant dense<0.000000e+00> : vector<8xf32>
    %105 = vector.multi_reduction <add>, %100, %cst_47 [1] : vector<8x128xf32> to vector<8xf32>
    %106 = vector.shape_cast %105 : vector<8xf32> to vector<8x1xf32>
    %cst_48 = arith.constant 1.280000e+02 : f32
    %107 = vector.broadcast %cst_48 : f32 to vector<8x1xf32>
    %108 = arith.divf %106, %107 : vector<8x1xf32>
    %109 = vector.broadcast %108 : vector<8x1xf32> to vector<8x128xf32>
    %110 = arith.subf %100, %109 : vector<8x128xf32>
    %111 = arith.mulf %110, %110 : vector<8x128xf32>
    %cst_49 = arith.constant dense<0.000000e+00> : vector<8xf32>
    %112 = vector.multi_reduction <add>, %111, %cst_49 [1] : vector<8x128xf32> to vector<8xf32>
    %113 = vector.shape_cast %112 : vector<8xf32> to vector<8x1xf32>
    %cst_50 = arith.constant 1.280000e+02 : f32
    %114 = vector.broadcast %cst_50 : f32 to vector<8x1xf32>
    %115 = arith.divf %113, %114 : vector<8x1xf32>
    %116 = vector.broadcast %108 : vector<8x1xf32> to vector<8x128xf32>
    %117 = arith.subf %100, %116 : vector<8x128xf32>
    %cst_51 = arith.constant 9.99999974E-6 : f32
    %118 = vector.broadcast %cst_51 : f32 to vector<8x1xf32>
    %119 = arith.addf %115, %118 : vector<8x1xf32>
    %120 = math.rsqrt %119 : vector<8x1xf32>
    %121 = vector.broadcast %120 : vector<8x1xf32> to vector<8x128xf32>
    %122 = arith.mulf %117, %121 : vector<8x128xf32>
    %123 = vector.broadcast %102 : vector<1x128xf32> to vector<8x128xf32>
    %124 = arith.mulf %122, %123 : vector<8x128xf32>
    %125 = vector.broadcast %104 : vector<1x128xf32> to vector<8x128xf32>
    %126 = arith.addf %124, %125 : vector<8x128xf32>
    %127 = arith.truncf %126 : vector<8x128xf32> to vector<8x128xbf16>
    %c0_52 = arith.constant 0 : index
    %c0_53 = arith.constant 0 : index
    %c0_54 = arith.constant 0 : index
    %128 = vector.load %arg12[%c0_52, %c0_53, %c0_54] : memref<1x128x256xbf16, #tpu.memory_space<vmem>>, vector<1x128x256xbf16>
    %129 = vector.shape_cast %128 : vector<1x128x256xbf16> to vector<128x256xbf16>
    %cst_55 = arith.constant dense<0.000000e+00> : vector<8x256xf32>
    %130 = tpu.matmul %127, %129, %cst_55 {dimension_numbers = #tpu.dot_dimension_numbers<[1], [0], [0], [1], [0, 0, 1, 1], [], []>} : vector<8x128xbf16>, vector<128x256xbf16>, vector<8x256xf32> -> vector<8x256xf32>
    %c0_56 = arith.constant 0 : index
    %c0_57 = arith.constant 0 : index
    %c0_58 = arith.constant 0 : index
    %131 = vector.load %arg13[%c0_56, %c0_57, %c0_58] : memref<1x1x256xf32, #tpu.memory_space<vmem>>, vector<1x1x256xf32>
    %132 = vector.shape_cast %131 : vector<1x1x256xf32> to vector<1x256xf32>
    %133 = vector.broadcast %132 : vector<1x256xf32> to vector<8x256xf32>
    %134 = arith.addf %130, %133 : vector<8x256xf32>
    %cst_59 = arith.constant 5.000000e-01 : f32
    %135 = vector.broadcast %cst_59 : f32 to vector<8x256xf32>
    %136 = arith.mulf %135, %134 : vector<8x256xf32>
    %cst_60 = arith.constant 4.471500e-02 : f32
    %137 = vector.broadcast %cst_60 : f32 to vector<8x256xf32>
    %138 = arith.mulf %137, %134 : vector<8x256xf32>
    %139 = arith.mulf %138, %134 : vector<8x256xf32>
    %140 = arith.mulf %139, %134 : vector<8x256xf32>
    %141 = arith.addf %134, %140 : vector<8x256xf32>
    %cst_61 = arith.constant 0.797884583 : f32
    %142 = vector.broadcast %cst_61 : f32 to vector<8x256xf32>
    %143 = arith.mulf %142, %141 : vector<8x256xf32>
    %144 = math.tanh %143 : vector<8x256xf32>
    %cst_62 = arith.constant 1.000000e+00 : f32
    %145 = vector.broadcast %cst_62 : f32 to vector<8x256xf32>
    %146 = arith.addf %145, %144 : vector<8x256xf32>
    %147 = arith.mulf %136, %146 : vector<8x256xf32>
    %148 = arith.truncf %147 : vector<8x256xf32> to vector<8x256xbf16>
    %c0_63 = arith.constant 0 : index
    %c0_64 = arith.constant 0 : index
    %c0_65 = arith.constant 0 : index
    %149 = vector.load %arg14[%c0_63, %c0_64, %c0_65] : memref<1x256x128xbf16, #tpu.memory_space<vmem>>, vector<1x256x128xbf16>
    %150 = vector.shape_cast %149 : vector<1x256x128xbf16> to vector<256x128xbf16>
    %cst_66 = arith.constant dense<0.000000e+00> : vector<8x128xf32>
    %151 = tpu.matmul %148, %150, %cst_66 {dimension_numbers = #tpu.dot_dimension_numbers<[1], [0], [0], [1], [0, 0, 1, 1], [], []>} : vector<8x256xbf16>, vector<256x128xbf16>, vector<8x128xf32> -> vector<8x128xf32>
    %c0_67 = arith.constant 0 : index
    %c0_68 = arith.constant 0 : index
    %c0_69 = arith.constant 0 : index
    %152 = vector.load %arg15[%c0_67, %c0_68, %c0_69] : memref<1x1x128xf32, #tpu.memory_space<vmem>>, vector<1x1x128xf32>
    %153 = vector.shape_cast %152 : vector<1x1x128xf32> to vector<1x128xf32>
    %154 = vector.broadcast %153 : vector<1x128xf32> to vector<8x128xf32>
    %155 = arith.addf %151, %154 : vector<8x128xf32>
    %156 = arith.addf %155, %126 : vector<8x128xf32>
    %c0_70 = arith.constant 0 : index
    %c0_71 = arith.constant 0 : index
    %c0_72 = arith.constant 0 : index
    %157 = vector.load %arg16[%c0_70, %c0_71, %c0_72] : memref<1x1x128xf32, #tpu.memory_space<vmem>>, vector<1x1x128xf32>
    %158 = vector.shape_cast %157 : vector<1x1x128xf32> to vector<1x128xf32>
    %c0_73 = arith.constant 0 : index
    %c0_74 = arith.constant 0 : index
    %c0_75 = arith.constant 0 : index
    %159 = vector.load %arg17[%c0_73, %c0_74, %c0_75] : memref<1x1x128xf32, #tpu.memory_space<vmem>>, vector<1x1x128xf32>
    %160 = vector.shape_cast %159 : vector<1x1x128xf32> to vector<1x128xf32>
    %cst_76 = arith.constant dense<0.000000e+00> : vector<8xf32>
    %161 = vector.multi_reduction <add>, %156, %cst_76 [1] : vector<8x128xf32> to vector<8xf32>
    %162 = vector.shape_cast %161 : vector<8xf32> to vector<8x1xf32>
    %cst_77 = arith.constant 1.280000e+02 : f32
    %163 = vector.broadcast %cst_77 : f32 to vector<8x1xf32>
    %164 = arith.divf %162, %163 : vector<8x1xf32>
    %165 = vector.broadcast %164 : vector<8x1xf32> to vector<8x128xf32>
    %166 = arith.subf %156, %165 : vector<8x128xf32>
    %167 = arith.mulf %166, %166 : vector<8x128xf32>
    %cst_78 = arith.constant dense<0.000000e+00> : vector<8xf32>
    %168 = vector.multi_reduction <add>, %167, %cst_78 [1] : vector<8x128xf32> to vector<8xf32>
    %169 = vector.shape_cast %168 : vector<8xf32> to vector<8x1xf32>
    %cst_79 = arith.constant 1.280000e+02 : f32
    %170 = vector.broadcast %cst_79 : f32 to vector<8x1xf32>
    %171 = arith.divf %169, %170 : vector<8x1xf32>
    %172 = vector.broadcast %164 : vector<8x1xf32> to vector<8x128xf32>
    %173 = arith.subf %156, %172 : vector<8x128xf32>
    %cst_80 = arith.constant 9.99999974E-6 : f32
    %174 = vector.broadcast %cst_80 : f32 to vector<8x1xf32>
    %175 = arith.addf %171, %174 : vector<8x1xf32>
    %176 = math.rsqrt %175 : vector<8x1xf32>
    %177 = vector.broadcast %176 : vector<8x1xf32> to vector<8x128xf32>
    %178 = arith.mulf %173, %177 : vector<8x128xf32>
    %179 = vector.broadcast %158 : vector<1x128xf32> to vector<8x128xf32>
    %180 = arith.mulf %178, %179 : vector<8x128xf32>
    %181 = vector.broadcast %160 : vector<1x128xf32> to vector<8x128xf32>
    %182 = arith.addf %180, %181 : vector<8x128xf32>
    %c0_81 = arith.constant 0 : index
    %c0_82 = arith.constant 0 : index
    %183 = vector.load %arg23[%c0_81, %c0_82] : memref<8x128xf32, #tpu.memory_space<vmem>>, vector<8x128xf32>
    tpu.vector_store %arg23[%c0_81, %c0_82], %182 {strides = array<i32>} : memref<8x128xf32, #tpu.memory_space<vmem>>, vector<8x128xf32>,
    %c0_83 = arith.constant 0 : index
    %c0_84 = arith.constant 0 : index
    %c0_85 = arith.constant 0 : index
    %c0_86 = arith.constant 0 : index
    %184 = vector.load %arg21[%c0_83, %c0_84, %c0_85, %c0_86] : memref<1x1x8x128xf32, #tpu.memory_space<vmem>>, vector<1x1x8x128xf32>
    %185 = vector.shape_cast %184 : vector<1x1x8x128xf32> to vector<8x128xf32>
    %186 = vector.shape_cast %182 : vector<8x128xf32> to vector<1x1x8x128xf32>
    tpu.vector_store %arg21[%c0_83, %c0_84, %c0_85, %c0_86], %186 {strides = array<i32>} : memref<1x1x8x128xf32, #tpu.memory_space<vmem>>, vector<1x1x8x128xf32>,
    %c1_i32 = arith.constant 1 : i32
    %187 = arith.cmpi eq, %arg1, %c1_i32 : i32
    %188 = arith.extui %187 : i1 to i32
    %c0_i32_87 = arith.constant 0 : i32
    %189 = arith.cmpi ne, %188, %c0_i32_87 : i32
    scf.if %189 {
      %190 = vector.extract_strided_slice %182 {offsets = [0, 0], sizes = [1, 128], strides = [1, 1]} : vector<8x128xf32> to vector<1x128xf32>
      %191 = arith.truncf %190 : vector<1x128xf32> to vector<1x128xbf16>
      %c0_88 = arith.constant 0 : index
      %c0_89 = arith.constant 0 : index
      %192 = vector.load %arg18[%c0_88, %c0_89] : memref<128x128xbf16, #tpu.memory_space<vmem>>, vector<128x128xbf16>
      %cst_90 = arith.constant dense<0.000000e+00> : vector<1x128xf32>
      %193 = tpu.matmul %191, %192, %cst_90 {dimension_numbers = #tpu.dot_dimension_numbers<[1], [0], [0], [1], [0, 0, 1, 1], [], []>} : vector<1x128xbf16>, vector<128x128xbf16>, vector<1x128xf32> -> vector<1x128xf32>
      %c0_91 = arith.constant 0 : index
      %c0_92 = arith.constant 0 : index
      %194 = vector.load %arg19[%c0_91, %c0_92] : memref<1x128xf32, #tpu.memory_space<vmem>>, vector<1x128xf32>
      %195 = arith.addf %193, %194 : vector<1x128xf32>
      %196 = math.tanh %195 : vector<1x128xf32>
      %c0_93 = arith.constant 0 : index
      %c0_94 = arith.constant 0 : index
      %c0_95 = arith.constant 0 : index
      %197 = vector.load %arg22[%c0_93, %c0_94, %c0_95] : memref<1x1x128xf32, #tpu.memory_space<vmem>>, vector<1x1x128xf32>
      %198 = vector.shape_cast %197 : vector<1x1x128xf32> to vector<1x128xf32>
      %199 = vector.shape_cast %196 : vector<1x128xf32> to vector<1x1x128xf32>
      tpu.vector_store %arg22[%c0_93, %c0_94, %c0_95], %199 {strides = array<i32>} : memref<1x1x128xf32, #tpu.memory_space<vmem>>, vector<1x1x128xf32>,
    } else {
    }
    return
  }
  func.func @transform_0(%arg0: i32, %arg1: i32) -> (i32, i32, i32) {
    %c0_i32 = arith.constant 0 : i32
    %c0_i32_0 = arith.constant 0 : i32
    %c0_i32_1 = arith.constant 0 : i32
    return %arg0, %c0_i32, %c0_i32_0 : i32, i32, i32
  }
  func.func @transform_1(%arg0: i32, %arg1: i32) -> (i32, i32, i32) {
    %c0_i32 = arith.constant 0 : i32
    %c0_i32_0 = arith.constant 0 : i32
    %c0_i32_1 = arith.constant 0 : i32
    return %arg0, %c0_i32, %c0_i32_0 : i32, i32, i32
  }
  func.func @transform_2(%arg0: i32, %arg1: i32) -> (i32, i32) {
    %c0_i32 = arith.constant 0 : i32
    %c0_i32_0 = arith.constant 0 : i32
    %c0_i32_1 = arith.constant 0 : i32
    return %c0_i32, %c0_i32_0 : i32, i32
  }
  func.func @transform_3(%arg0: i32, %arg1: i32) -> (i32, i32) {
    %c0_i32 = arith.constant 0 : i32
    %c0_i32_0 = arith.constant 0 : i32
    %c0_i32_1 = arith.constant 0 : i32
    return %c0_i32, %c0_i32_0 : i32, i32
  }
  func.func @transform_4(%arg0: i32, %arg1: i32) -> (i32, i32, i32) {
    %c0_i32 = arith.constant 0 : i32
    %c0_i32_0 = arith.constant 0 : i32
    %c0_i32_1 = arith.constant 0 : i32
    return %arg1, %c0_i32, %c0_i32_0 : i32, i32, i32
  }
  func.func @transform_5(%arg0: i32, %arg1: i32) -> (i32, i32, i32) {
    %c0_i32 = arith.constant 0 : i32
    %c0_i32_0 = arith.constant 0 : i32
    %c0_i32_1 = arith.constant 0 : i32
    return %arg1, %c0_i32, %c0_i32_0 : i32, i32, i32
  }
  func.func @transform_6(%arg0: i32, %arg1: i32) -> (i32, i32, i32) {
    %c0_i32 = arith.constant 0 : i32
    %c0_i32_0 = arith.constant 0 : i32
    %c0_i32_1 = arith.constant 0 : i32
    return %arg1, %c0_i32, %c0_i32_0 : i32, i32, i32
  }
  func.func @transform_7(%arg0: i32, %arg1: i32) -> (i32, i32, i32) {
    %c0_i32 = arith.constant 0 : i32
    %c0_i32_0 = arith.constant 0 : i32
    %c0_i32_1 = arith.constant 0 : i32
    return %arg1, %c0_i32, %c0_i32_0 : i32, i32, i32
  }
  func.func @transform_8(%arg0: i32, %arg1: i32) -> (i32, i32, i32) {
    %c0_i32 = arith.constant 0 : i32
    %c0_i32_0 = arith.constant 0 : i32
    %c0_i32_1 = arith.constant 0 : i32
    return %arg1, %c0_i32, %c0_i32_0 : i32, i32, i32
  }
  func.func @transform_9(%arg0: i32, %arg1: i32) -> (i32, i32, i32) {
    %c0_i32 = arith.constant 0 : i32
    %c0_i32_0 = arith.constant 0 : i32
    %c0_i32_1 = arith.constant 0 : i32
    return %arg1, %c0_i32, %c0_i32_0 : i32, i32, i32
  }
  func.func @transform_10(%arg0: i32, %arg1: i32) -> (i32, i32, i32) {
    %c0_i32 = arith.constant 0 : i32
    %c0_i32_0 = arith.constant 0 : i32
    %c0_i32_1 = arith.constant 0 : i32
    return %arg1, %c0_i32, %c0_i32_0 : i32, i32, i32
  }
  func.func @transform_11(%arg0: i32, %arg1: i32) -> (i32, i32, i32) {
    %c0_i32 = arith.constant 0 : i32
    %c0_i32_0 = arith.constant 0 : i32
    %c0_i32_1 = arith.constant 0 : i32
    return %arg1, %c0_i32, %c0_i32_0 : i32, i32, i32
  }
  func.func @transform_12(%arg0: i32, %arg1: i32) -> (i32, i32, i32) {
    %c0_i32 = arith.constant 0 : i32
    %c0_i32_0 = arith.constant 0 : i32
    %c0_i32_1 = arith.constant 0 : i32
    return %arg1, %c0_i32, %c0_i32_0 : i32, i32, i32
  }
  func.func @transform_13(%arg0: i32, %arg1: i32) -> (i32, i32, i32) {
    %c0_i32 = arith.constant 0 : i32
    %c0_i32_0 = arith.constant 0 : i32
    %c0_i32_1 = arith.constant 0 : i32
    return %arg1, %c0_i32, %c0_i32_0 : i32, i32, i32
  }
  func.func @transform_14(%arg0: i32, %arg1: i32) -> (i32, i32, i32) {
    %c0_i32 = arith.constant 0 : i32
    %c0_i32_0 = arith.constant 0 : i32
    %c0_i32_1 = arith.constant 0 : i32
    return %arg1, %c0_i32, %c0_i32_0 : i32, i32, i32
  }
  func.func @transform_15(%arg0: i32, %arg1: i32) -> (i32, i32, i32) {
    %c0_i32 = arith.constant 0 : i32
    %c0_i32_0 = arith.constant 0 : i32
    %c0_i32_1 = arith.constant 0 : i32
    return %arg1, %c0_i32, %c0_i32_0 : i32, i32, i32
  }
  func.func @transform_16(%arg0: i32, %arg1: i32) -> (i32, i32) {
    %c0_i32 = arith.constant 0 : i32
    %c0_i32_0 = arith.constant 0 : i32
    %c0_i32_1 = arith.constant 0 : i32
    return %c0_i32, %c0_i32_0 : i32, i32
  }
  func.func @transform_17(%arg0: i32, %arg1: i32) -> (i32, i32) {
    %c0_i32 = arith.constant 0 : i32
    %c0_i32_0 = arith.constant 0 : i32
    %c0_i32_1 = arith.constant 0 : i32
    return %c0_i32, %c0_i32_0 : i32, i32
  }
  func.func @transform_18(%arg0: i32, %arg1: i32) -> (i32, i32, i32) {
    %c0_i32 = arith.constant 0 : i32
    %c0_i32_0 = arith.constant 0 : i32
    %c0_i32_1 = arith.constant 0 : i32
    return %arg0, %c0_i32, %c0_i32_0 : i32, i32, i32
  }
  func.func @transform_19(%arg0: i32, %arg1: i32) -> (i32, i32, i32, i32) {
    %c0_i32 = arith.constant 0 : i32
    %c0_i32_0 = arith.constant 0 : i32
    %c0_i32_1 = arith.constant 0 : i32
    return %arg1, %arg0, %c0_i32, %c0_i32_0 : i32, i32, i32, i32
  }
  func.func @transform_20(%arg0: i32, %arg1: i32) -> (i32, i32, i32) {
    %c0_i32 = arith.constant 0 : i32
    %c0_i32_0 = arith.constant 0 : i32
    %c0_i32_1 = arith.constant 0 : i32
    return %arg0, %c0_i32, %c0_i32_0 : i32, i32, i32
  }
}

</mosaic_0001>

<llo_original>
// kernel: tpu_custom_call.1
$region0: #{tpu_custom_call.1}
  #allocation0 [shape = 'u32[]', space=smem, size = 0x4, offset = 0x4, fixed_abs, tag = 'smem constant byte address 0x4 - core index']
  #allocation1 [shape = 'u32[72,128]{1,0:T(1,128)}', space=vmem, size = 0x9000, scoped, tag = 'internal scratch']
  #allocation2 [shape = 'f32[8,128]{1,0:T(8,128)}', space=vmem, size = 0x1000, scoped, tag = 'scratch operand']
  #allocation3 [shape = 'f32[8,128]{1,0:T(8,128)}', space=vmem, size = 0x1000, scoped, tag = 'scratch operand']
  %s0 = inlined_call_operand.hbm [shape: f32[2,8,128], index: 0, kind: input, shape index: {}]
  %s1 = inlined_call_operand.hbm [shape: f32[2,1,8], index: 1, kind: input, shape index: {}]
  %s2 = inlined_call_operand.hbm [shape: f32[1,128], index: 2, kind: input, shape index: {}]
  %s3 = inlined_call_operand.hbm [shape: f32[1,128], index: 3, kind: input, shape index: {}]
  %s4 = inlined_call_operand.hbm [shape: bf16[2,128,384], index: 4, kind: input, shape index: {}]
  %s5 = inlined_call_operand.hbm [shape: f32[2,1,384], index: 5, kind: input, shape index: {}]
  %s6 = inlined_call_operand.hbm [shape: bf16[2,128,128], index: 6, kind: input, shape index: {}]
  %s7 = inlined_call_operand.vmem [shape: f32[2,1,128], index: 7, kind: input, shape index: {}]
  %s8 = inlined_call_operand.hbm [shape: f32[2,1,128], index: 8, kind: input, shape index: {}]
  %s9 = inlined_call_operand.vmem [shape: f32[2,1,128], index: 9, kind: input, shape index: {}]
  %s10 = inlined_call_operand.hbm [shape: bf16[2,128,256], index: 10, kind: input, shape index: {}]
  %s11 = inlined_call_operand.vmem [shape: f32[2,1,256], index: 11, kind: input, shape index: {}]
  %s12 = inlined_call_operand.hbm [shape: bf16[2,256,128], index: 12, kind: input, shape index: {}]
  %s13 = inlined_call_operand.vmem [shape: f32[2,1,128], index: 13, kind: input, shape index: {}]
  %s14 = inlined_call_operand.vmem [shape: f32[2,1,128], index: 14, kind: input, shape index: {}]
  %s15 = inlined_call_operand.vmem [shape: f32[2,1,128], index: 15, kind: input, shape index: {}]
  %s16 = inlined_call_operand.hbm [shape: bf16[128,128], index: 16, kind: input, shape index: {}]
  %s17 = inlined_call_operand.vmem [shape: f32[1,128], index: 17, kind: input, shape index: {}]
  %s18 = inlined_call_operand.hbm [shape: f32[2,8,128], index: 18, kind: output, shape index: {0}]
  %s19 = inlined_call_operand.hbm [shape: f32[2,2,8,128], index: 19, kind: output, shape index: {1}]
  %s20 = inlined_call_operand.hbm [shape: f32[2,1,128], index: 20, kind: output, shape index: {2}]
  %21 = xla_tuple %s18, %s19, %s20
  %s22 = sld [smem:[#allocation0]]
  $region173: #{tpu_custom_call.1} parent=0
    _
  %s24 = ssub.s32 1, %s22
  %s25 = scalar_select 0, %s24, %s22
  $region1: #{tpu_custom_call.1} parent=0
    #allocation4 [shape = 'u8[8192]{0}', space=vmem, size = 0x2000, scoped, tag = 'input window, operand 0']
    #allocation5 [shape = 's32[2]{0}', space=sflag, size = 0x8, scoped, tag = 'scoped memory for tpu_custom_call.1']
    #allocation6 [shape = 's32[2]{0}', space=sflag, size = 0x8, scoped, tag = 'scoped memory for tpu_custom_call.1']
    #allocation7 [shape = 'u8[1024]{0}', space=vmem, size = 0x400, scoped, tag = 'input window, operand 1']
    #allocation8 [shape = 's32[2]{0}', space=sflag, size = 0x8, scoped, tag = 'scoped memory for tpu_custom_call.1']
    #allocation9 [shape = 'u8[512]{0}', space=vmem, size = 0x400, scoped, tag = 'input window, operand 2, single buffered']
    #allocation10 [shape = 'u8[512]{0}', space=vmem, size = 0x400, scoped, tag = 'input window, operand 3, single buffered']
    #allocation11 [shape = 's32[1]{0}', space=sflag, size = 0x4, scoped, tag = 'scoped memory for tpu_custom_call.1']
    #allocation12 [shape = 'u8[196608]{0}', space=vmem, size = 0x30000, scoped, tag = 'input window, operand 4']
    #allocation13 [shape = 'u8[3072]{0}', space=vmem, size = 0xc00, scoped, tag = 'input window, operand 5']
    #allocation14 [shape = 'u8[65536]{0}', space=vmem, size = 0x10000, scoped, tag = 'input window, operand 6']
    #allocation15 [shape = 'u8[1024]{0}', space=vmem, size = 0x400, scoped, tag = 'input window, operand 8']
    #allocation16 [shape = 'u8[131072]{0}', space=vmem, size = 0x20000, scoped, tag = 'input window, operand 10']
    #allocation17 [shape = 'u8[131072]{0}', space=vmem, size = 0x20000, scoped, tag = 'input window, operand 12']
    #allocation18 [shape = 'u8[32768]{0}', space=vmem, size = 0x8000, scoped, tag = 'input window, operand 16, single buffered']
    #allocation19 [shape = 'u8[8192]{0}', space=vmem, size = 0x2000, scoped, tag = 'output window, operand 0']
    #allocation20 [shape = 'u8[8192]{0}', space=vmem, size = 0x2000, scoped, tag = 'output window, operand 1']
    #allocation21 [shape = 's32[2]{0}', space=sflag, size = 0x8, scoped, tag = 'scoped memory for tpu_custom_call.1']
    #allocation22 [shape = 'u8[1024]{0}', space=vmem, size = 0x400, scoped, tag = 'output window, operand 2']
    %26 = vsyncpa [#allocation5], 0
    %s27 = scalar_lea.sflag [#allocation5], 1
    %28 = vsyncpa %s27, 0
    %29 = vsyncpa [#allocation8], 0
    %s30 = scalar_lea.sflag [#allocation8], 1
    %31 = vsyncpa %s30, 0
    %32 = vsyncpa [#allocation11], 0
    %33 = vsyncpa [#allocation6], 0
    %s34 = scalar_lea.sflag [#allocation6], 1
    %35 = vsyncpa %s34, 0
    %36 = vsyncpa [#allocation21], 0
    %s37 = scalar_lea.sflag [#allocation21], 1
    %38 = vsyncpa %s37, 0
    loop: start=0, step=1, limit=6
    $region2: #{tpu_custom_call.1} parent=1 // loop_pre_header
      _
    $region3: #{tpu_custom_call.1} parent=1 // loop_header
      %s40 = sphi 0, %s44
      %p41 = scmp.ge.s32.totalorder %s40, 6
      %s47 = sphi 0, %s59
      %s48 = sphi 0, %s55
      %s49 = sphi 0, %s47
      %s50 = sphi 0, %s48
      %s51 = sphi 0, %s49
      %s52 = sphi 0, %s50
      %s62 = sphi 0, %s64
      %s65 = sphi 0, %s62
      %s66 = sphi 0, %s65
      %s82 = sphi 0, %s66
      %s88 = sphi 0, %s90
      %s91 = sphi 0, %s88
      %s92 = sphi 0, %s91
      %s108 = sphi 0, %s92
      %s112 = sphi 0, %s112
      %s114 = sphi 0, %s112
      %s115 = sphi 0, %s114
      %s129 = sphi 0, %s115
      %s133 = sphi 0, %s133
      %s135 = sphi 0, %s133
      %s136 = sphi 0, %s135
      %s150 = sphi 0, %s136
      %s156 = sphi 0, %s158
      %s159 = sphi 0, %s156
      %s160 = sphi 0, %s159
      %s176 = sphi 0, %s160
      %s182 = sphi 0, %s184
      %s185 = sphi 0, %s182
      %s186 = sphi 0, %s185
      %s202 = sphi 0, %s186
      %s208 = sphi 0, %s210
      %s211 = sphi 0, %s208
      %s212 = sphi 0, %s211
      %s228 = sphi 0, %s212
      %s234 = sphi 0, %s236
      %s237 = sphi 0, %s234
      %s238 = sphi 0, %s237
      %s254 = sphi 0, %s238
      %s260 = sphi 0, %s262
      %s263 = sphi 0, %s260
      %s264 = sphi 0, %s263
      %s280 = sphi 0, %s264
      %s286 = sphi 0, %s288
      %s289 = sphi 0, %s286
      %s290 = sphi 0, %s289
      %s306 = sphi 0, %s290
      %s312 = sphi 0, %s314
      %s315 = sphi 0, %s312
      %s316 = sphi 0, %s315
      %s332 = sphi 0, %s316
      %s338 = sphi 0, %s340
      %s341 = sphi 0, %s338
      %s342 = sphi 0, %s341
      %s358 = sphi 0, %s342
      %s364 = sphi 0, %s366
      %s367 = sphi 0, %s364
      %s368 = sphi 0, %s367
      %s384 = sphi 0, %s368
      %s390 = sphi 0, %s392
      %s393 = sphi 0, %s390
      %s394 = sphi 0, %s393
      %s410 = sphi 0, %s394
      %s416 = sphi 0, %s418
      %s419 = sphi 0, %s416
      %s420 = sphi 0, %s419
      %s436 = sphi 0, %s420
      %s442 = sphi 0, %s444
      %s445 = sphi 0, %s442
      %s446 = sphi 0, %s445
      %s462 = sphi 0, %s446
      %s466 = sphi 0, %s466
      %s468 = sphi 0, %s466
      %s469 = sphi 0, %s468
      %s483 = sphi 0, %s469
      %s487 = sphi 0, %s487
      %s489 = sphi 0, %s487
      %s490 = sphi 0, %s489
      %s504 = sphi 0, %s490
      %s510 = sphi 0, %s512
      %s513 = sphi 0, %s510
      %s514 = sphi 0, %s513
      %s530 = sphi 0, %s514
      %s538 = sphi 0, %s540
      %s541 = sphi 0, %s538
      %s542 = sphi 0, %s541
      %s558 = sphi 0, %s542
      %s564 = sphi 0, %s566
      %s567 = sphi 0, %s564
      %s568 = sphi 0, %s567
      %s584 = sphi 0, %s568
    $region4: #{tpu_custom_call.1} parent=1 // loop_header_branch
      %43 = sbr.rel (%p41) target = $region8
    $region5: #{tpu_custom_call.1} parent=1 // loop_body
      %s45 = ssub.s32 %s40, 1
      %s46 = ssub.s32 %s40, 2
      %s53 = sadd.s32 1, %s48
      %p54 = scmp.ge.s32.totalorder %s53, 2
      %s55 = scalar_select %p54, 0, %s53
      %s56 = sadd.s32 1, %s47
      %s57 = scalar_select %p54, %s56, %s47
      %p58 = scmp.ge.s32.totalorder %s57, 2
      %s59 = scalar_select %p58, 0, %s57
      %s60 = ssub.s32 %s47, %s59
      %p61 = scmp.eq.s32.totalorder %s60, 0
      %s63 = sadd.s32 %s62, 1
      %s64 = scalar_select %p61, %s62, %s63
      %p67 = pneg %p61
      %p68 = scmp.eq.s32.totalorder %s40, 3
      %p69 = por %p67, %p68
      %p70 = scmp.ne.s32.totalorder %s62, %s65
      %p71 = scmp.eq.s32.totalorder %s40, 0
      %p72 = por %p70, %p71
      %p73 = scmp.ne.s32.totalorder %s62, %s65
      %p74 = scmp.eq.s32.totalorder %s45, 3
      %p75 = por %p73, %p74
      %p76 = scmp.ne.s32.totalorder %s65, %s66
      %p77 = scmp.eq.s32.totalorder %s45, 0
      %p78 = por %p76, %p77
      %p79 = scmp.ne.s32.totalorder %s65, %s66
      %p80 = scmp.eq.s32.totalorder %s46, 3
      %p81 = por %p79, %p80
      %p83 = scmp.ne.s32.totalorder %s66, %s82
      %p84 = scmp.eq.s32.totalorder %s46, 0
      %p85 = por %p83, %p84
      %s86 = ssub.s32 %s47, %s59
      %p87 = scmp.eq.s32.totalorder %s86, 0
      %s89 = sadd.s32 %s88, 1
      %s90 = scalar_select %p87, %s88, %s89
      %p93 = pneg %p87
      %p94 = scmp.eq.s32.totalorder %s40, 3
      %p95 = por %p93, %p94
      %p96 = scmp.ne.s32.totalorder %s88, %s91
      %p97 = scmp.eq.s32.totalorder %s40, 0
      %p98 = por %p96, %p97
      %p99 = scmp.ne.s32.totalorder %s88, %s91
      %p100 = scmp.eq.s32.totalorder %s45, 3
      %p101 = por %p99, %p100
      %p102 = scmp.ne.s32.totalorder %s91, %s92
      %p103 = scmp.eq.s32.totalorder %s45, 0
      %p104 = por %p102, %p103
      %p105 = scmp.ne.s32.totalorder %s91, %s92
      %p106 = scmp.eq.s32.totalorder %s46, 3
      %p107 = por %p105, %p106
      %p109 = scmp.ne.s32.totalorder %s92, %s108
      %p110 = scmp.eq.s32.totalorder %s46, 0
      %p111 = por %p109, %p110
      %s113 = sadd.s32 %s112, 1
      %p116 = scmp.eq.s32.totalorder %s40, 3
      %p117 = scmp.ne.s32.totalorder %s112, %s114
      %p118 = scmp.eq.s32.totalorder %s40, 0
      %p119 = por %p117, %p118
      %p120 = scmp.ne.s32.totalorder %s112, %s114
      %p121 = scmp.eq.s32.totalorder %s45, 3
      %p122 = por %p120, %p121
      %p123 = scmp.ne.s32.totalorder %s114, %s115
      %p124 = scmp.eq.s32.totalorder %s45, 0
      %p125 = por %p123, %p124
      %p126 = scmp.ne.s32.totalorder %s114, %s115
      %p127 = scmp.eq.s32.totalorder %s46, 3
      %p128 = por %p126, %p127
      %p130 = scmp.ne.s32.totalorder %s115, %s129
      %p131 = scmp.eq.s32.totalorder %s46, 0
      %p132 = por %p130, %p131
      %s134 = sadd.s32 %s133, 1
      %p137 = scmp.eq.s32.totalorder %s40, 3
      %p138 = scmp.ne.s32.totalorder %s133, %s135
      %p139 = scmp.eq.s32.totalorder %s40, 0
      %p140 = por %p138, %p139
      %p141 = scmp.ne.s32.totalorder %s133, %s135
      %p142 = scmp.eq.s32.totalorder %s45, 3
      %p143 = por %p141, %p142
      %p144 = scmp.ne.s32.totalorder %s135, %s136
      %p145 = scmp.eq.s32.totalorder %s45, 0
      %p146 = por %p144, %p145
      %p147 = scmp.ne.s32.totalorder %s135, %s136
      %p148 = scmp.eq.s32.totalorder %s46, 3
      %p149 = por %p147, %p148
      %p151 = scmp.ne.s32.totalorder %s136, %s150
      %p152 = scmp.eq.s32.totalorder %s46, 0
      %p153 = por %p151, %p152
      %s154 = ssub.s32 %s48, %s55
      %p155 = scmp.eq.s32.totalorder %s154, 0
      %s157 = sadd.s32 %s156, 1
      %s158 = scalar_select %p155, %s156, %s157
      %p161 = pneg %p155
      %p162 = scmp.eq.s32.totalorder %s40, 3
      %p163 = por %p161, %p162
      %p164 = scmp.ne.s32.totalorder %s156, %s159
      %p165 = scmp.eq.s32.totalorder %s40, 0
      %p166 = por %p164, %p165
      %p167 = scmp.ne.s32.totalorder %s156, %s159
      %p168 = scmp.eq.s32.totalorder %s45, 3
      %p169 = por %p167, %p168
      %p170 = scmp.ne.s32.totalorder %s159, %s160
      %p171 = scmp.eq.s32.totalorder %s45, 0
      %p172 = por %p170, %p171
      %p173 = scmp.ne.s32.totalorder %s159, %s160
      %p174 = scmp.eq.s32.totalorder %s46, 3
      %p175 = por %p173, %p174
      %p177 = scmp.ne.s32.totalorder %s160, %s176
      %p178 = scmp.eq.s32.totalorder %s46, 0
      %p179 = por %p177, %p178
      %s180 = ssub.s32 %s48, %s55
      %p181 = scmp.eq.s32.totalorder %s180, 0
      %s183 = sadd.s32 %s182, 1
      %s184 = scalar_select %p181, %s182, %s183
      %p187 = pneg %p181
      %p188 = scmp.eq.s32.totalorder %s40, 3
      %p189 = por %p187, %p188
      %p190 = scmp.ne.s32.totalorder %s182, %s185
      %p191 = scmp.eq.s32.totalorder %s40, 0
      %p192 = por %p190, %p191
      %p193 = scmp.ne.s32.totalorder %s182, %s185
      %p194 = scmp.eq.s32.totalorder %s45, 3
      %p195 = por %p193, %p194
      %p196 = scmp.ne.s32.totalorder %s185, %s186
      %p197 = scmp.eq.s32.totalorder %s45, 0
      %p198 = por %p196, %p197
      %p199 = scmp.ne.s32.totalorder %s185, %s186
      %p200 = scmp.eq.s32.totalorder %s46, 3
      %p201 = por %p199, %p200
      %p203 = scmp.ne.s32.totalorder %s186, %s202
      %p204 = scmp.eq.s32.totalorder %s46, 0
      %p205 = por %p203, %p204
      %s206 = ssub.s32 %s48, %s55
      %p207 = scmp.eq.s32.totalorder %s206, 0
      %s209 = sadd.s32 %s208, 1
      %s210 = scalar_select %p207, %s208, %s209
      %p213 = pneg %p207
      %p214 = scmp.eq.s32.totalorder %s40, 3
      %p215 = por %p213, %p214
      %p216 = scmp.ne.s32.totalorder %s208, %s211
      %p217 = scmp.eq.s32.totalorder %s40, 0
      %p218 = por %p216, %p217
      %p219 = scmp.ne.s32.totalorder %s208, %s211
      %p220 = scmp.eq.s32.totalorder %s45, 3
      %p221 = por %p219, %p220
      %p222 = scmp.ne.s32.totalorder %s211, %s212
      %p223 = scmp.eq.s32.totalorder %s45, 0
      %p224 = por %p222, %p223
      %p225 = scmp.ne.s32.totalorder %s211, %s212
      %p226 = scmp.eq.s32.totalorder %s46, 3
      %p227 = por %p225, %p226
      %p229 = scmp.ne.s32.totalorder %s212, %s228
      %p230 = scmp.eq.s32.totalorder %s46, 0
      %p231 = por %p229, %p230
      %s232 = ssub.s32 %s48, %s55
      %p233 = scmp.eq.s32.totalorder %s232, 0
      %s235 = sadd.s32 %s234, 1
      %s236 = scalar_select %p233, %s234, %s235
      %p239 = pneg %p233
      %p240 = scmp.eq.s32.totalorder %s40, 3
      %p241 = por %p239, %p240
      %p242 = scmp.ne.s32.totalorder %s234, %s237
      %p243 = scmp.eq.s32.totalorder %s40, 0
      %p244 = por %p242, %p243
      %p245 = scmp.ne.s32.totalorder %s234, %s237
      %p246 = scmp.eq.s32.totalorder %s45, 3
      %p247 = por %p245, %p246
      %p248 = scmp.ne.s32.totalorder %s237, %s238
      %p249 = scmp.eq.s32.totalorder %s45, 0
      %p250 = por %p248, %p249
      %p251 = scmp.ne.s32.totalorder %s237, %s238
      %p252 = scmp.eq.s32.totalorder %s46, 3
      %p253 = por %p251, %p252
      %p255 = scmp.ne.s32.totalorder %s238, %s254
      %p256 = scmp.eq.s32.totalorder %s46, 0
      %p257 = por %p255, %p256
      %s258 = ssub.s32 %s48, %s55
      %p259 = scmp.eq.s32.totalorder %s258, 0
      %s261 = sadd.s32 %s260, 1
      %s262 = scalar_select %p259, %s260, %s261
      %p265 = pneg %p259
      %p266 = scmp.eq.s32.totalorder %s40, 3
      %p267 = por %p265, %p266
      %p268 = scmp.ne.s32.totalorder %s260, %s263
      %p269 = scmp.eq.s32.totalorder %s40, 0
      %p270 = por %p268, %p269
      %p271 = scmp.ne.s32.totalorder %s260, %s263
      %p272 = scmp.eq.s32.totalorder %s45, 3
      %p273 = por %p271, %p272
      %p274 = scmp.ne.s32.totalorder %s263, %s264
      %p275 = scmp.eq.s32.totalorder %s45, 0
      %p276 = por %p274, %p275
      %p277 = scmp.ne.s32.totalorder %s263, %s264
      %p278 = scmp.eq.s32.totalorder %s46, 3
      %p279 = por %p277, %p278
      %p281 = scmp.ne.s32.totalorder %s264, %s280
      %p282 = scmp.eq.s32.totalorder %s46, 0
      %p283 = por %p281, %p282
      %s284 = ssub.s32 %s48, %s55
      %p285 = scmp.eq.s32.totalorder %s284, 0
      %s287 = sadd.s32 %s286, 1
      %s288 = scalar_select %p285, %s286, %s287
      %p291 = pneg %p285
      %p292 = scmp.eq.s32.totalorder %s40, 3
      %p293 = por %p291, %p292
      %p294 = scmp.ne.s32.totalorder %s286, %s289
      %p295 = scmp.eq.s32.totalorder %s40, 0
      %p296 = por %p294, %p295
      %p297 = scmp.ne.s32.totalorder %s286, %s289
      %p298 = scmp.eq.s32.totalorder %s45, 3
      %p299 = por %p297, %p298
      %p300 = scmp.ne.s32.totalorder %s289, %s290
      %p301 = scmp.eq.s32.totalorder %s45, 0
      %p302 = por %p300, %p301
      %p303 = scmp.ne.s32.totalorder %s289, %s290
      %p304 = scmp.eq.s32.totalorder %s46, 3
      %p305 = por %p303, %p304
      %p307 = scmp.ne.s32.totalorder %s290, %s306
      %p308 = scmp.eq.s32.totalorder %s46, 0
      %p309 = por %p307, %p308
      %s310 = ssub.s32 %s48, %s55
      %p311 = scmp.eq.s32.totalorder %s310, 0
      %s313 = sadd.s32 %s312, 1
      %s314 = scalar_select %p311, %s312, %s313
      %p317 = pneg %p311
      %p318 = scmp.eq.s32.totalorder %s40, 3
      %p319 = por %p317, %p318
      %p320 = scmp.ne.s32.totalorder %s312, %s315
      %p321 = scmp.eq.s32.totalorder %s40, 0
      %p322 = por %p320, %p321
      %p323 = scmp.ne.s32.totalorder %s312, %s315
      %p324 = scmp.eq.s32.totalorder %s45, 3
      %p325 = por %p323, %p324
      %p326 = scmp.ne.s32.totalorder %s315, %s316
      %p327 = scmp.eq.s32.totalorder %s45, 0
      %p328 = por %p326, %p327
      %p329 = scmp.ne.s32.totalorder %s315, %s316
      %p330 = scmp.eq.s32.totalorder %s46, 3
      %p331 = por %p329, %p330
      %p333 = scmp.ne.s32.totalorder %s316, %s332
      %p334 = scmp.eq.s32.totalorder %s46, 0
      %p335 = por %p333, %p334
      %s336 = ssub.s32 %s48, %s55
      %p337 = scmp.eq.s32.totalorder %s336, 0
      %s339 = sadd.s32 %s338, 1
      %s340 = scalar_select %p337, %s338, %s339
      %p343 = pneg %p337
      %p344 = scmp.eq.s32.totalorder %s40, 3
      %p345 = por %p343, %p344
      %p346 = scmp.ne.s32.totalorder %s338, %s341
      %p347 = scmp.eq.s32.totalorder %s40, 0
      %p348 = por %p346, %p347
      %p349 = scmp.ne.s32.totalorder %s338, %s341
      %p350 = scmp.eq.s32.totalorder %s45, 3
      %p351 = por %p349, %p350
      %p352 = scmp.ne.s32.totalorder %s341, %s342
      %p353 = scmp.eq.s32.totalorder %s45, 0
      %p354 = por %p352, %p353
      %p355 = scmp.ne.s32.totalorder %s341, %s342
      %p356 = scmp.eq.s32.totalorder %s46, 3
      %p357 = por %p355, %p356
      %p359 = scmp.ne.s32.totalorder %s342, %s358
      %p360 = scmp.eq.s32.totalorder %s46, 0
      %p361 = por %p359, %p360
      %s362 = ssub.s32 %s48, %s55
      %p363 = scmp.eq.s32.totalorder %s362, 0
      %s365 = sadd.s32 %s364, 1
      %s366 = scalar_select %p363, %s364, %s365
      %p369 = pneg %p363
      %p370 = scmp.eq.s32.totalorder %s40, 3
      %p371 = por %p369, %p370
      %p372 = scmp.ne.s32.totalorder %s364, %s367
      %p373 = scmp.eq.s32.totalorder %s40, 0
      %p374 = por %p372, %p373
      %p375 = scmp.ne.s32.totalorder %s364, %s367
      %p376 = scmp.eq.s32.totalorder %s45, 3
      %p377 = por %p375, %p376
      %p378 = scmp.ne.s32.totalorder %s367, %s368
      %p379 = scmp.eq.s32.totalorder %s45, 0
      %p380 = por %p378, %p379
      %p381 = scmp.ne.s32.totalorder %s367, %s368
      %p382 = scmp.eq.s32.totalorder %s46, 3
      %p383 = por %p381, %p382
      %p385 = scmp.ne.s32.totalorder %s368, %s384
      %p386 = scmp.eq.s32.totalorder %s46, 0
      %p387 = por %p385, %p386
      %s388 = ssub.s32 %s48, %s55
      %p389 = scmp.eq.s32.totalorder %s388, 0
      %s391 = sadd.s32 %s390, 1
      %s392 = scalar_select %p389, %s390, %s391
      %p395 = pneg %p389
      %p396 = scmp.eq.s32.totalorder %s40, 3
      %p397 = por %p395, %p396
      %p398 = scmp.ne.s32.totalorder %s390, %s393
      %p399 = scmp.eq.s32.totalorder %s40, 0
      %p400 = por %p398, %p399
      %p401 = scmp.ne.s32.totalorder %s390, %s393
      %p402 = scmp.eq.s32.totalorder %s45, 3
      %p403 = por %p401, %p402
      %p404 = scmp.ne.s32.totalorder %s393, %s394
      %p405 = scmp.eq.s32.totalorder %s45, 0
      %p406 = por %p404, %p405
      %p407 = scmp.ne.s32.totalorder %s393, %s394
      %p408 = scmp.eq.s32.totalorder %s46, 3
      %p409 = por %p407, %p408
      %p411 = scmp.ne.s32.totalorder %s394, %s410
      %p412 = scmp.eq.s32.totalorder %s46, 0
      %p413 = por %p411, %p412
      %s414 = ssub.s32 %s48, %s55
      %p415 = scmp.eq.s32.totalorder %s414, 0
      %s417 = sadd.s32 %s416, 1
      %s418 = scalar_select %p415, %s416, %s417
      %p421 = pneg %p415
      %p422 = scmp.eq.s32.totalorder %s40, 3
      %p423 = por %p421, %p422
      %p424 = scmp.ne.s32.totalorder %s416, %s419
      %p425 = scmp.eq.s32.totalorder %s40, 0
      %p426 = por %p424, %p425
      %p427 = scmp.ne.s32.totalorder %s416, %s419
      %p428 = scmp.eq.s32.totalorder %s45, 3
      %p429 = por %p427, %p428
      %p430 = scmp.ne.s32.totalorder %s419, %s420
      %p431 = scmp.eq.s32.totalorder %s45, 0
      %p432 = por %p430, %p431
      %p433 = scmp.ne.s32.totalorder %s419, %s420
      %p434 = scmp.eq.s32.totalorder %s46, 3
      %p435 = por %p433, %p434
      %p437 = scmp.ne.s32.totalorder %s420, %s436
      %p438 = scmp.eq.s32.totalorder %s46, 0
      %p439 = por %p437, %p438
      %s440 = ssub.s32 %s48, %s55
      %p441 = scmp.eq.s32.totalorder %s440, 0
      %s443 = sadd.s32 %s442, 1
      %s444 = scalar_select %p441, %s442, %s443
      %p447 = pneg %p441
      %p448 = scmp.eq.s32.totalorder %s40, 3
      %p449 = por %p447, %p448
      %p450 = scmp.ne.s32.totalorder %s442, %s445
      %p451 = scmp.eq.s32.totalorder %s40, 0
      %p452 = por %p450, %p451
      %p453 = scmp.ne.s32.totalorder %s442, %s445
      %p454 = scmp.eq.s32.totalorder %s45, 3
      %p455 = por %p453, %p454
      %p456 = scmp.ne.s32.totalorder %s445, %s446
      %p457 = scmp.eq.s32.totalorder %s45, 0
      %p458 = por %p456, %p457
      %p459 = scmp.ne.s32.totalorder %s445, %s446
      %p460 = scmp.eq.s32.totalorder %s46, 3
      %p461 = por %p459, %p460
      %p463 = scmp.ne.s32.totalorder %s446, %s462
      %p464 = scmp.eq.s32.totalorder %s46, 0
      %p465 = por %p463, %p464
      %s467 = sadd.s32 %s466, 1
      %p470 = scmp.eq.s32.totalorder %s40, 3
      %p471 = scmp.ne.s32.totalorder %s466, %s468
      %p472 = scmp.eq.s32.totalorder %s40, 0
      %p473 = por %p471, %p472
      %p474 = scmp.ne.s32.totalorder %s466, %s468
      %p475 = scmp.eq.s32.totalorder %s45, 3
      %p476 = por %p474, %p475
      %p477 = scmp.ne.s32.totalorder %s468, %s469
      %p478 = scmp.eq.s32.totalorder %s45, 0
      %p479 = por %p477, %p478
      %p480 = scmp.ne.s32.totalorder %s468, %s469
      %p481 = scmp.eq.s32.totalorder %s46, 3
      %p482 = por %p480, %p481
      %p484 = scmp.ne.s32.totalorder %s469, %s483
      %p485 = scmp.eq.s32.totalorder %s46, 0
      %p486 = por %p484, %p485
      %s488 = sadd.s32 %s487, 1
      %p491 = scmp.eq.s32.totalorder %s40, 3
      %p492 = scmp.ne.s32.totalorder %s487, %s489
      %p493 = scmp.eq.s32.totalorder %s40, 0
      %p494 = por %p492, %p493
      %p495 = scmp.ne.s32.totalorder %s487, %s489
      %p496 = scmp.eq.s32.totalorder %s45, 3
      %p497 = por %p495, %p496
      %p498 = scmp.ne.s32.totalorder %s489, %s490
      %p499 = scmp.eq.s32.totalorder %s45, 0
      %p500 = por %p498, %p499
      %p501 = scmp.ne.s32.totalorder %s489, %s490
      %p502 = scmp.eq.s32.totalorder %s46, 3
      %p503 = por %p501, %p502
      %p505 = scmp.ne.s32.totalorder %s490, %s504
      %p506 = scmp.eq.s32.totalorder %s46, 0
      %p507 = por %p505, %p506
      %s508 = ssub.s32 %s47, %s59
      %p509 = scmp.eq.s32.totalorder %s508, 0
      %s511 = sadd.s32 %s510, 1
      %s512 = scalar_select %p509, %s510, %s511
      %p515 = pneg %p509
      %p516 = scmp.eq.s32.totalorder %s40, 3
      %p517 = por %p515, %p516
      %p518 = scmp.ne.s32.totalorder %s510, %s513
      %p519 = scmp.eq.s32.totalorder %s40, 0
      %p520 = por %p518, %p519
      %p521 = scmp.ne.s32.totalorder %s510, %s513
      %p522 = scmp.eq.s32.totalorder %s45, 3
      %p523 = por %p521, %p522
      %p524 = scmp.ne.s32.totalorder %s513, %s514
      %p525 = scmp.eq.s32.totalorder %s45, 0
      %p526 = por %p524, %p525
      %p527 = scmp.ne.s32.totalorder %s513, %s514
      %p528 = scmp.eq.s32.totalorder %s46, 3
      %p529 = por %p527, %p528
      %p531 = scmp.ne.s32.totalorder %s514, %s530
      %p532 = scmp.eq.s32.totalorder %s46, 0
      %p533 = por %p531, %p532
      %s534 = ssub.s32 %s48, %s55
      %s535 = ssub.s32 %s47, %s59
      %s536 = sor.u32 %s534, %s535
      %p537 = scmp.eq.s32.totalorder %s536, 0
      %s539 = sadd.s32 %s538, 1
      %s540 = scalar_select %p537, %s538, %s539
      %p543 = pneg %p537
      %p544 = scmp.eq.s32.totalorder %s40, 3
      %p545 = por %p543, %p544
      %p546 = scmp.ne.s32.totalorder %s538, %s541
      %p547 = scmp.eq.s32.totalorder %s40, 0
      %p548 = por %p546, %p547
      %p549 = scmp.ne.s32.totalorder %s538, %s541
      %p550 = scmp.eq.s32.totalorder %s45, 3
      %p551 = por %p549, %p550
      %p552 = scmp.ne.s32.totalorder %s541, %s542
      %p553 = scmp.eq.s32.totalorder %s45, 0
      %p554 = por %p552, %p553
      %p555 = scmp.ne.s32.totalorder %s541, %s542
      %p556 = scmp.eq.s32.totalorder %s46, 3
      %p557 = por %p555, %p556
      %p559 = scmp.ne.s32.totalorder %s542, %s558
      %p560 = scmp.eq.s32.totalorder %s46, 0
      %p561 = por %p559, %p560
      %s562 = ssub.s32 %s47, %s59
      %p563 = scmp.eq.s32.totalorder %s562, 0
      %s565 = sadd.s32 %s564, 1
      %s566 = scalar_select %p563, %s564, %s565
      %p569 = pneg %p563
      %p570 = scmp.eq.s32.totalorder %s40, 3
      %p571 = por %p569, %p570
      %p572 = scmp.ne.s32.totalorder %s564, %s567
      %p573 = scmp.eq.s32.totalorder %s40, 0
      %p574 = por %p572, %p573
      %p575 = scmp.ne.s32.totalorder %s564, %s567
      %p576 = scmp.eq.s32.totalorder %s45, 3
      %p577 = por %p575, %p576
      %p578 = scmp.ne.s32.totalorder %s567, %s568
      %p579 = scmp.eq.s32.totalorder %s45, 0
      %p580 = por %p578, %p579
      %p581 = scmp.ne.s32.totalorder %s567, %s568
      %p582 = scmp.eq.s32.totalorder %s46, 3
      %p583 = por %p581, %p582
      %p585 = scmp.ne.s32.totalorder %s568, %s584
      %p586 = scmp.eq.s32.totalorder %s46, 0
      %p587 = por %p585, %p586
      %p588 = scmp.le.s32.totalorder 1, %s40
      %p589 = scmp.lt.s32.totalorder %s40, 5
      %p590 = pnand %p588, %p589
      %p591 = pneg %p590
      // Predicated region
      $region9: #{tpu_custom_call.1} parent=5 // pred_check
        _
      $region10: #{tpu_custom_call.1} parent=5 // pred_check_branch
        %593 = sbr.rel (%p590) target = $region12
      $region11: #{tpu_custom_call.1} parent=5 // pred_region
        %s594 = ssub.s32 %s40, 1
        // Predicated region
        $region13: #{tpu_custom_call.1} parent=11 // pred_check
          %p595 = pneg %p125
        $region14: #{tpu_custom_call.1} parent=11 // pred_check_branch
          %597 = sbr.rel (%p595) target = $region16
        $region15: #{tpu_custom_call.1} parent=11 // pred_region
          %599 = vsyncadd [#allocation8], 0
          %s601 = sshll.u32 %s2, 4
          %s602 = int_to_ptr.hbm [resolvable:$true] %s601
          %s603 = sshll.u32 [#allocation9], 4
          %s604 = int_to_ptr.vmem [resolvable:$true] %s603
          %606 = dma.hbm_to_vmem [thread:$0]  %s602, 16, %s604, [#allocation8]
        $region16: #{tpu_custom_call.1} parent=11 // pred_fallthru
          _
        // Predicated region
        $region17: #{tpu_custom_call.1} parent=11 // pred_check
          %p607 = pneg %p146
        $region18: #{tpu_custom_call.1} parent=11 // pred_check_branch
          %609 = sbr.rel (%p607) target = $region20
        $region19: #{tpu_custom_call.1} parent=11 // pred_region
          %611 = vsyncadd [#allocation11], 0
          %s613 = sshll.u32 %s3, 4
          %s614 = int_to_ptr.hbm [resolvable:$true] %s613
          %s615 = sshll.u32 [#allocation10], 4
          %s616 = int_to_ptr.vmem [resolvable:$true] %s615
          %618 = dma.hbm_to_vmem [thread:$0]  %s614, 16, %s616, [#allocation11]
        $region20: #{tpu_custom_call.1} parent=11 // pred_fallthru
          _
        // Predicated region
        $region21: #{tpu_custom_call.1} parent=11 // pred_check
          %p619 = pneg %p479
        $region22: #{tpu_custom_call.1} parent=11 // pred_check_branch
          %621 = sbr.rel (%p619) target = $region24
        $region23: #{tpu_custom_call.1} parent=11 // pred_region
          %623 = vsyncadd [#allocation11], 0
          %s624 = sshll.u32 %s16, 4
          %s625 = int_to_ptr.hbm [resolvable:$true] %s624
          %s626 = sshll.u32 [#allocation18], 4
          %s627 = int_to_ptr.vmem [resolvable:$true] %s626
          %632 = dma.hbm_to_vmem [thread:$0]  %s625, 1024, %s627, [#allocation11], 64, 64, 4
        $region24: #{tpu_custom_call.1} parent=11 // pred_fallthru
          _
        // Predicated region
        $region25: #{tpu_custom_call.1} parent=11 // pred_check
          %p633 = pneg %p500
        $region26: #{tpu_custom_call.1} parent=11 // pred_check_branch
          %635 = sbr.rel (%p633) target = $region28
        $region27: #{tpu_custom_call.1} parent=11 // pred_region
          _
        $region28: #{tpu_custom_call.1} parent=11 // pred_fallthru
          _
      $region12: #{tpu_custom_call.1} parent=5 // pred_fallthru
        _
      %p636 = scmp.lt.s32.totalorder %s40, 4
      // Predicated region
      $region29: #{tpu_custom_call.1} parent=5 // pred_check
        %p637 = pneg %p636
      $region30: #{tpu_custom_call.1} parent=5 // pred_check_branch
        %639 = sbr.rel (%p637) target = $region32
      $region31: #{tpu_custom_call.1} parent=5 // pred_region
        // Predicated region
        $region33: #{tpu_custom_call.1} parent=31 // pred_check
          %p640 = pneg %p72
        $region34: #{tpu_custom_call.1} parent=31 // pred_check_branch
          %642 = sbr.rel (%p640) target = $region36
        $region35: #{tpu_custom_call.1} parent=31 // pred_region
          %s643 = sand.u32 %s40, 1
          %s644 = scalar_lea.sflag [#allocation5], %s643
          %s645 = sand.u32 %s62, 1
          %s646 = smul.addr %s645, 8
          %s647 = scalar_lea.vmem [#allocation4], %s646
          %649 = vsyncadd %s644, 0
          %s650 = smul.addr %s47, 8
          %s651 = scalar_lea.hbm %s0, %s650
          %s653 = sshll.u32 %s651, 4
          %s654 = int_to_ptr.hbm [resolvable:$true] %s653
          %s655 = sshll.u32 %s647, 4
          %s656 = int_to_ptr.vmem [resolvable:$true] %s655
          %658 = dma.hbm_to_vmem [thread:$0]  %s654, 128, %s656, %s644
        $region36: #{tpu_custom_call.1} parent=31 // pred_fallthru
          _
        // Predicated region
        $region37: #{tpu_custom_call.1} parent=31 // pred_check
          %p659 = pneg %p98
        $region38: #{tpu_custom_call.1} parent=31 // pred_check_branch
          %661 = sbr.rel (%p659) target = $region40
        $region39: #{tpu_custom_call.1} parent=31 // pred_region
          %s662 = sand.u32 %s40, 1
          %s663 = scalar_lea.sflag [#allocation8], %s662
          %s664 = sand.u32 %s88, 1
          %s665 = scalar_lea.vmem [#allocation7], %s664
          %667 = vsyncadd %s663, 0
          %s668 = scalar_lea.hbm %s1, %s47
          %s670 = sshll.u32 %s668, 4
          %s671 = int_to_ptr.hbm [resolvable:$true] %s670
          %s672 = sshll.u32 %s665, 4
          %s673 = int_to_ptr.vmem [resolvable:$true] %s672
          %675 = dma.hbm_to_vmem [thread:$0]  %s671, 16, %s673, %s663
        $region40: #{tpu_custom_call.1} parent=31 // pred_fallthru
          _
        // Predicated region
        $region41: #{tpu_custom_call.1} parent=31 // pred_check
          %p676 = pneg %p166
        $region42: #{tpu_custom_call.1} parent=31 // pred_check_branch
          %678 = sbr.rel (%p676) target = $region44
        $region43: #{tpu_custom_call.1} parent=31 // pred_region
          %s679 = sand.u32 %s40, 1
          %s680 = scalar_lea.sflag [#allocation5], %s679
          %s681 = sand.u32 %s156, 1
          %s682 = smul.addr %s681, 192
          %s683 = scalar_lea.vmem [#allocation12], %s682
          %685 = vsyncadd %s680, 0
          %s686 = smul.addr %s48, 48
          %s687 = smul.addr %s686, 4
          %s688 = scalar_lea.hbm %s4, %s687
          %s689 = sshll.u32 %s688, 4
          %s690 = int_to_ptr.hbm [resolvable:$true] %s689
          %s691 = sshll.u32 %s683, 4
          %s692 = int_to_ptr.vmem [resolvable:$true] %s691
          %697 = dma.hbm_to_vmem [thread:$0]  %s690, 3072, %s692, %s680, 192, 192, 12
        $region44: #{tpu_custom_call.1} parent=31 // pred_fallthru
          _
        // Predicated region
        $region45: #{tpu_custom_call.1} parent=31 // pred_check
          %p698 = pneg %p192
        $region46: #{tpu_custom_call.1} parent=31 // pred_check_branch
          %700 = sbr.rel (%p698) target = $region48
        $region47: #{tpu_custom_call.1} parent=31 // pred_region
          %s701 = sand.u32 %s40, 1
          %s702 = scalar_lea.sflag [#allocation8], %s701
          %s703 = sand.u32 %s182, 1
          %s704 = smul.addr %s703, 3
          %s705 = scalar_lea.vmem [#allocation13], %s704
          %707 = vsyncadd %s702, 0
          %s708 = smul.addr %s48, 3
          %s709 = scalar_lea.hbm %s5, %s708
          %s711 = sshll.u32 %s709, 4
          %s712 = int_to_ptr.hbm [resolvable:$true] %s711
          %s713 = sshll.u32 %s705, 4
          %s714 = int_to_ptr.vmem [resolvable:$true] %s713
          %716 = dma.hbm_to_vmem [thread:$0]  %s712, 48, %s714, %s702
        $region48: #{tpu_custom_call.1} parent=31 // pred_fallthru
          _
        // Predicated region
        $region49: #{tpu_custom_call.1} parent=31 // pred_check
          %p717 = pneg %p218
        $region50: #{tpu_custom_call.1} parent=31 // pred_check_branch
          %719 = sbr.rel (%p717) target = $region52
        $region51: #{tpu_custom_call.1} parent=31 // pred_region
          %s720 = sand.u32 %s40, 1
          %s721 = scalar_lea.sflag [#allocation5], %s720
          %s722 = sand.u32 %s208, 1
          %s723 = smul.addr %s722, 64
          %s724 = scalar_lea.vmem [#allocation14], %s723
          %726 = vsyncadd %s721, 0
          %s727 = smul.addr %s48, 16
          %s728 = smul.addr %s727, 4
          %s729 = scalar_lea.hbm %s6, %s728
          %s730 = sshll.u32 %s729, 4
          %s731 = int_to_ptr.hbm [resolvable:$true] %s730
          %s732 = sshll.u32 %s724, 4
          %s733 = int_to_ptr.vmem [resolvable:$true] %s732
          %738 = dma.hbm_to_vmem [thread:$0]  %s731, 1024, %s733, %s721, 64, 64, 4
        $region52: #{tpu_custom_call.1} parent=31 // pred_fallthru
          _
        // Predicated region
        $region53: #{tpu_custom_call.1} parent=31 // pred_check
          %p739 = pneg %p244
        $region54: #{tpu_custom_call.1} parent=31 // pred_check_branch
          %741 = sbr.rel (%p739) target = $region56
        $region55: #{tpu_custom_call.1} parent=31 // pred_region
          %p742 = scmp.lt.s32.totalorder %s48, 1
          %s743 = scalar_select %p742, %s48, 1
          %s744 = scalar_lea.vmem %s7, %s743
        $region56: #{tpu_custom_call.1} parent=31 // pred_fallthru
          _
        // Predicated region
        $region57: #{tpu_custom_call.1} parent=31 // pred_check
          %p745 = pneg %p270
        $region58: #{tpu_custom_call.1} parent=31 // pred_check_branch
          %747 = sbr.rel (%p745) target = $region60
        $region59: #{tpu_custom_call.1} parent=31 // pred_region
          %s748 = sand.u32 %s40, 1
          %s749 = scalar_lea.sflag [#allocation8], %s748
          %s750 = sand.u32 %s260, 1
          %s751 = scalar_lea.vmem [#allocation15], %s750
          %753 = vsyncadd %s749, 0
          %s754 = scalar_lea.hbm %s8, %s48
          %s756 = sshll.u32 %s754, 4
          %s757 = int_to_ptr.hbm [resolvable:$true] %s756
          %s758 = sshll.u32 %s751, 4
          %s759 = int_to_ptr.vmem [resolvable:$true] %s758
          %761 = dma.hbm_to_vmem [thread:$0]  %s757, 16, %s759, %s749
        $region60: #{tpu_custom_call.1} parent=31 // pred_fallthru
          _
        // Predicated region
        $region61: #{tpu_custom_call.1} parent=31 // pred_check
          %p762 = pneg %p296
        $region62: #{tpu_custom_call.1} parent=31 // pred_check_branch
          %764 = sbr.rel (%p762) target = $region64
        $region63: #{tpu_custom_call.1} parent=31 // pred_region
          %p765 = scmp.lt.s32.totalorder %s48, 1
          %s766 = scalar_select %p765, %s48, 1
          %s767 = scalar_lea.vmem %s9, %s766
        $region64: #{tpu_custom_call.1} parent=31 // pred_fallthru
          _
        // Predicated region
        $region65: #{tpu_custom_call.1} parent=31 // pred_check
          %p768 = pneg %p322
        $region66: #{tpu_custom_call.1} parent=31 // pred_check_branch
          %770 = sbr.rel (%p768) target = $region68
        $region67: #{tpu_custom_call.1} parent=31 // pred_region
          %s771 = sand.u32 %s40, 1
          %s772 = scalar_lea.sflag [#allocation5], %s771
          %s773 = sand.u32 %s312, 1
          %s774 = smul.addr %s773, 128
          %s775 = scalar_lea.vmem [#allocation16], %s774
          %777 = vsyncadd %s772, 0
          %s778 = smul.addr %s48, 32
          %s779 = smul.addr %s778, 4
          %s780 = scalar_lea.hbm %s10, %s779
          %s781 = sshll.u32 %s780, 4
          %s782 = int_to_ptr.hbm [resolvable:$true] %s781
          %s783 = sshll.u32 %s775, 4
          %s784 = int_to_ptr.vmem [resolvable:$true] %s783
          %789 = dma.hbm_to_vmem [thread:$0]  %s782, 2048, %s784, %s772, 128, 128, 8
        $region68: #{tpu_custom_call.1} parent=31 // pred_fallthru
          _
        // Predicated region
        $region69: #{tpu_custom_call.1} parent=31 // pred_check
          %p790 = pneg %p348
        $region70: #{tpu_custom_call.1} parent=31 // pred_check_branch
          %792 = sbr.rel (%p790) target = $region72
        $region71: #{tpu_custom_call.1} parent=31 // pred_region
          %p793 = scmp.lt.s32.totalorder %s48, 1
          %s794 = scalar_select %p793, %s48, 1
          %s795 = smul.addr %s794, 2
          %s796 = scalar_lea.vmem %s11, %s795
        $region72: #{tpu_custom_call.1} parent=31 // pred_fallthru
          _
        // Predicated region
        $region73: #{tpu_custom_call.1} parent=31 // pred_check
          %p797 = pneg %p374
        $region74: #{tpu_custom_call.1} parent=31 // pred_check_branch
          %799 = sbr.rel (%p797) target = $region76
        $region75: #{tpu_custom_call.1} parent=31 // pred_region
          %s800 = sand.u32 %s40, 1
          %s801 = scalar_lea.sflag [#allocation8], %s800
          %s802 = sand.u32 %s364, 1
          %s803 = smul.addr %s802, 128
          %s804 = scalar_lea.vmem [#allocation17], %s803
          %806 = vsyncadd %s801, 0
          %s807 = smul.addr %s48, 32
          %s808 = smul.addr %s807, 4
          %s809 = scalar_lea.hbm %s12, %s808
          %s810 = sshll.u32 %s809, 4
          %s811 = int_to_ptr.hbm [resolvable:$true] %s810
          %s812 = sshll.u32 %s804, 4
          %s813 = int_to_ptr.vmem [resolvable:$true] %s812
          %818 = dma.hbm_to_vmem [thread:$0]  %s811, 2048, %s813, %s801, 64, 64, 4
        $region76: #{tpu_custom_call.1} parent=31 // pred_fallthru
          _
        // Predicated region
        $region77: #{tpu_custom_call.1} parent=31 // pred_check
          %p819 = pneg %p400
        $region78: #{tpu_custom_call.1} parent=31 // pred_check_branch
          %821 = sbr.rel (%p819) target = $region80
        $region79: #{tpu_custom_call.1} parent=31 // pred_region
          %p822 = scmp.lt.s32.totalorder %s48, 1
          %s823 = scalar_select %p822, %s48, 1
          %s824 = scalar_lea.vmem %s13, %s823
        $region80: #{tpu_custom_call.1} parent=31 // pred_fallthru
          _
        // Predicated region
        $region81: #{tpu_custom_call.1} parent=31 // pred_check
          %p825 = pneg %p426
        $region82: #{tpu_custom_call.1} parent=31 // pred_check_branch
          %827 = sbr.rel (%p825) target = $region84
        $region83: #{tpu_custom_call.1} parent=31 // pred_region
          %p828 = scmp.lt.s32.totalorder %s48, 1
          %s829 = scalar_select %p828, %s48, 1
          %s830 = scalar_lea.vmem %s14, %s829
        $region84: #{tpu_custom_call.1} parent=31 // pred_fallthru
          _
        // Predicated region
        $region85: #{tpu_custom_call.1} parent=31 // pred_check
          %p831 = pneg %p452
        $region86: #{tpu_custom_call.1} parent=31 // pred_check_branch
          %833 = sbr.rel (%p831) target = $region88
        $region87: #{tpu_custom_call.1} parent=31 // pred_region
          %p834 = scmp.lt.s32.totalorder %s48, 1
          %s835 = scalar_select %p834, %s48, 1
          %s836 = scalar_lea.vmem %s15, %s835
        $region88: #{tpu_custom_call.1} parent=31 // pred_fallthru
          _
      $region32: #{tpu_custom_call.1} parent=5 // pred_fallthru
        _
      %p837 = scmp.le.s32.totalorder 1, %s40
      %p838 = scmp.lt.s32.totalorder %s40, 5
      %p839 = pnand %p837, %p838
      %p840 = pneg %p839
      // Predicated region
      $region89: #{tpu_custom_call.1} parent=5 // pred_check
        _
      $region90: #{tpu_custom_call.1} parent=5 // pred_check_branch
        %842 = sbr.rel (%p839) target = $region92
      $region91: #{tpu_custom_call.1} parent=5 // pred_region
        %s843 = ssub.s32 %s40, 1
        %s844 = sand.u32 %s45, 1
        %s845 = scalar_lea.sflag [#allocation5], %s844
        %s846 = sand.u32 %s65, 1
        %s847 = smul.addr %s846, 8
        %s848 = scalar_lea.vmem [#allocation4], %s847
        // Predicated region
        $region93: #{tpu_custom_call.1} parent=91 // pred_check
          %p849 = pneg %p78
        $region94: #{tpu_custom_call.1} parent=91 // pred_check_branch
          %851 = sbr.rel (%p849) target = $region96
        $region95: #{tpu_custom_call.1} parent=91 // pred_region
          %853 = dma.done %s845, 128
        $region96: #{tpu_custom_call.1} parent=91 // pred_fallthru
          _
        %s854 = sand.u32 %s45, 1
        %s855 = scalar_lea.sflag [#allocation8], %s854
        %s856 = sand.u32 %s91, 1
        %s857 = scalar_lea.vmem [#allocation7], %s856
        // Predicated region
        $region97: #{tpu_custom_call.1} parent=91 // pred_check
          %p858 = pneg %p104
        $region98: #{tpu_custom_call.1} parent=91 // pred_check_branch
          %860 = sbr.rel (%p858) target = $region100
        $region99: #{tpu_custom_call.1} parent=91 // pred_region
          %862 = dma.done %s855, 16
        $region100: #{tpu_custom_call.1} parent=91 // pred_fallthru
          _
        // Predicated region
        $region101: #{tpu_custom_call.1} parent=91 // pred_check
          %p863 = pneg %p125
        $region102: #{tpu_custom_call.1} parent=91 // pred_check_branch
          %865 = sbr.rel (%p863) target = $region104
        $region103: #{tpu_custom_call.1} parent=91 // pred_region
          %867 = dma.done [#allocation8], 16
        $region104: #{tpu_custom_call.1} parent=91 // pred_fallthru
          _
        // Predicated region
        $region105: #{tpu_custom_call.1} parent=91 // pred_check
          %p868 = pneg %p146
        $region106: #{tpu_custom_call.1} parent=91 // pred_check_branch
          %870 = sbr.rel (%p868) target = $region108
        $region107: #{tpu_custom_call.1} parent=91 // pred_region
          %872 = dma.done [#allocation11], 16
        $region108: #{tpu_custom_call.1} parent=91 // pred_fallthru
          _
        %s873 = sand.u32 %s45, 1
        %s874 = scalar_lea.sflag [#allocation5], %s873
        %s875 = sand.u32 %s159, 1
        %s876 = smul.addr %s875, 192
        %s877 = scalar_lea.vmem [#allocation12], %s876
        // Predicated region
        $region109: #{tpu_custom_call.1} parent=91 // pred_check
          %p878 = pneg %p172
        $region110: #{tpu_custom_call.1} parent=91 // pred_check_branch
          %880 = sbr.rel (%p878) target = $region112
        $region111: #{tpu_custom_call.1} parent=91 // pred_region
          %882 = dma.done %s874, 3072
        $region112: #{tpu_custom_call.1} parent=91 // pred_fallthru
          _
        %s883 = sand.u32 %s45, 1
        %s884 = scalar_lea.sflag [#allocation8], %s883
        %s885 = sand.u32 %s185, 1
        %s886 = smul.addr %s885, 3
        %s887 = scalar_lea.vmem [#allocation13], %s886
        // Predicated region
        $region113: #{tpu_custom_call.1} parent=91 // pred_check
          %p888 = pneg %p198
        $region114: #{tpu_custom_call.1} parent=91 // pred_check_branch
          %890 = sbr.rel (%p888) target = $region116
        $region115: #{tpu_custom_call.1} parent=91 // pred_region
          %892 = dma.done %s884, 48
        $region116: #{tpu_custom_call.1} parent=91 // pred_fallthru
          _
        %s893 = sand.u32 %s45, 1
        %s894 = scalar_lea.sflag [#allocation5], %s893
        %s895 = sand.u32 %s211, 1
        %s896 = smul.addr %s895, 64
        %s897 = scalar_lea.vmem [#allocation14], %s896
        // Predicated region
        $region117: #{tpu_custom_call.1} parent=91 // pred_check
          %p898 = pneg %p224
        $region118: #{tpu_custom_call.1} parent=91 // pred_check_branch
          %900 = sbr.rel (%p898) target = $region120
        $region119: #{tpu_custom_call.1} parent=91 // pred_region
          %902 = dma.done %s894, 1024
        $region120: #{tpu_custom_call.1} parent=91 // pred_fallthru
          _
        %s903 = sand.u32 %s45, 1
        %s904 = scalar_lea.sflag [#allocation8], %s903
        %s905 = sand.u32 %s263, 1
        %s906 = scalar_lea.vmem [#allocation15], %s905
        // Predicated region
        $region121: #{tpu_custom_call.1} parent=91 // pred_check
          %p907 = pneg %p276
        $region122: #{tpu_custom_call.1} parent=91 // pred_check_branch
          %909 = sbr.rel (%p907) target = $region124
        $region123: #{tpu_custom_call.1} parent=91 // pred_region
          %911 = dma.done %s904, 16
        $region124: #{tpu_custom_call.1} parent=91 // pred_fallthru
          _
        %s912 = sand.u32 %s45, 1
        %s913 = scalar_lea.sflag [#allocation5], %s912
        %s914 = sand.u32 %s315, 1
        %s915 = smul.addr %s914, 128
        %s916 = scalar_lea.vmem [#allocation16], %s915
        // Predicated region
        $region125: #{tpu_custom_call.1} parent=91 // pred_check
          %p917 = pneg %p328
        $region126: #{tpu_custom_call.1} parent=91 // pred_check_branch
          %919 = sbr.rel (%p917) target = $region128
        $region127: #{tpu_custom_call.1} parent=91 // pred_region
          %921 = dma.done %s913, 2048
        $region128: #{tpu_custom_call.1} parent=91 // pred_fallthru
          _
        %s922 = sand.u32 %s45, 1
        %s923 = scalar_lea.sflag [#allocation8], %s922
        %s924 = sand.u32 %s367, 1
        %s925 = smul.addr %s924, 128
        %s926 = scalar_lea.vmem [#allocation17], %s925
        // Predicated region
        $region129: #{tpu_custom_call.1} parent=91 // pred_check
          %p927 = pneg %p380
        $region130: #{tpu_custom_call.1} parent=91 // pred_check_branch
          %929 = sbr.rel (%p927) target = $region132
        $region131: #{tpu_custom_call.1} parent=91 // pred_region
          %931 = dma.done %s923, 2048
        $region132: #{tpu_custom_call.1} parent=91 // pred_fallthru
          _
        // Predicated region
        $region133: #{tpu_custom_call.1} parent=91 // pred_check
          %p932 = pneg %p479
        $region134: #{tpu_custom_call.1} parent=91 // pred_check_branch
          %934 = sbr.rel (%p932) target = $region136
        $region135: #{tpu_custom_call.1} parent=91 // pred_region
          %936 = dma.done [#allocation11], 1024
        $region136: #{tpu_custom_call.1} parent=91 // pred_fallthru
          _
        %s937 = sand.u32 %s45, 1
        %s938 = scalar_lea.sflag [#allocation5], %s937
        %s939 = sand.u32 %s65, 1
        %s940 = smul.addr %s939, 8
        %s941 = scalar_lea.vmem [#allocation4], %s940
        %p942 = pneg %p78
        %p943 = pneg %p75
        %s944 = sand.u32 %s45, 1
        %s945 = scalar_lea.sflag [#allocation8], %s944
        %s946 = sand.u32 %s91, 1
        %s947 = scalar_lea.vmem [#allocation7], %s946
        %p948 = pneg %p104
        %p949 = pneg %p101
        %p950 = pneg %p125
        %p951 = pneg %p122
        %p952 = pneg %p146
        %p953 = pneg %p143
        %s954 = sand.u32 %s45, 1
        %s955 = scalar_lea.sflag [#allocation5], %s954
        %s956 = sand.u32 %s159, 1
        %s957 = smul.addr %s956, 192
        %s958 = scalar_lea.vmem [#allocation12], %s957
        %p959 = pneg %p172
        %p960 = pneg %p169
        %s961 = sand.u32 %s45, 1
        %s962 = scalar_lea.sflag [#allocation8], %s961
        %s963 = sand.u32 %s185, 1
        %s964 = smul.addr %s963, 3
        %s965 = scalar_lea.vmem [#allocation13], %s964
        %p966 = pneg %p198
        %p967 = pneg %p195
        %s968 = sand.u32 %s45, 1
        %s969 = scalar_lea.sflag [#allocation5], %s968
        %s970 = sand.u32 %s211, 1
        %s971 = smul.addr %s970, 64
        %s972 = scalar_lea.vmem [#allocation14], %s971
        %p973 = pneg %p224
        %p974 = pneg %p221
        %p975 = scmp.lt.s32.totalorder %s50, 1
        %s976 = scalar_select %p975, %s50, 1
        %s977 = scalar_lea.vmem %s7, %s976
        %p978 = pneg %p250
        %p979 = pneg %p247
        %s980 = sand.u32 %s45, 1
        %s981 = scalar_lea.sflag [#allocation8], %s980
        %s982 = sand.u32 %s263, 1
        %s983 = scalar_lea.vmem [#allocation15], %s982
        %p984 = pneg %p276
        %p985 = pneg %p273
        %p986 = scmp.lt.s32.totalorder %s50, 1
        %s987 = scalar_select %p986, %s50, 1
        %s988 = scalar_lea.vmem %s9, %s987
        %p989 = pneg %p302
        %p990 = pneg %p299
        %s991 = sand.u32 %s45, 1
        %s992 = scalar_lea.sflag [#allocation5], %s991
        %s993 = sand.u32 %s315, 1
        %s994 = smul.addr %s993, 128
        %s995 = scalar_lea.vmem [#allocation16], %s994
        %p996 = pneg %p328
        %p997 = pneg %p325
        %p998 = scmp.lt.s32.totalorder %s50, 1
        %s999 = scalar_select %p998, %s50, 1
        %s1000 = smul.addr %s999, 2
        %s1001 = scalar_lea.vmem %s11, %s1000
        %p1002 = pneg %p354
        %p1003 = pneg %p351
        %s1004 = sand.u32 %s45, 1
        %s1005 = scalar_lea.sflag [#allocation8], %s1004
        %s1006 = sand.u32 %s367, 1
        %s1007 = smul.addr %s1006, 128
        %s1008 = scalar_lea.vmem [#allocation17], %s1007
        %p1009 = pneg %p380
        %p1010 = pneg %p377
        %p1011 = scmp.lt.s32.totalorder %s50, 1
        %s1012 = scalar_select %p1011, %s50, 1
        %s1013 = scalar_lea.vmem %s13, %s1012
        %p1014 = pneg %p406
        %p1015 = pneg %p403
        %p1016 = scmp.lt.s32.totalorder %s50, 1
        %s1017 = scalar_select %p1016, %s50, 1
        %s1018 = scalar_lea.vmem %s14, %s1017
        %p1019 = pneg %p432
        %p1020 = pneg %p429
        %p1021 = scmp.lt.s32.totalorder %s50, 1
        %s1022 = scalar_select %p1021, %s50, 1
        %s1023 = scalar_lea.vmem %s15, %s1022
        %p1024 = pneg %p458
        %p1025 = pneg %p455
        %p1026 = pneg %p479
        %p1027 = pneg %p476
        %p1028 = pneg %p500
        %p1029 = pneg %p497
        %p1030 = pneg %p526
        %p1031 = pneg %p523
        %s1032 = sand.u32 %s513, 1
        %s1033 = scalar_lea.sflag [#allocation6], %s1032
        %s1034 = sand.u32 %s513, 1
        %s1035 = smul.addr %s1034, 8
        %s1036 = scalar_lea.vmem [#allocation19], %s1035
        %p1037 = pneg %p554
        %p1038 = pneg %p551
        %s1039 = sand.u32 %s45, 1
        %s1040 = scalar_lea.sflag [#allocation21], %s1039
        %s1041 = sand.u32 %s541, 1
        %s1042 = smul.addr %s1041, 8
        %s1043 = scalar_lea.vmem [#allocation20], %s1042
        %p1044 = pneg %p580
        %p1045 = pneg %p577
        %s1046 = sand.u32 %s45, 1
        %s1047 = scalar_lea.sflag [#allocation21], %s1046
        %s1048 = sand.u32 %s567, 1
        %s1049 = scalar_lea.vmem [#allocation22], %s1048
        %p1050 = scmp.lt.s32.totalorder %s50, 1
        %s1051 = scalar_select %p1050, %s50, 1
        %s1052 = scalar_lea.vmem %s7, %s1051
        %p1053 = scmp.lt.s32.totalorder %s50, 1
        %s1054 = scalar_select %p1053, %s50, 1
        %s1055 = scalar_lea.vmem %s9, %s1054
        %p1056 = scmp.lt.s32.totalorder %s50, 1
        %s1057 = scalar_select %p1056, %s50, 1
        %s1058 = smul.addr %s1057, 2
        %s1059 = scalar_lea.vmem %s11, %s1058
        %p1060 = scmp.lt.s32.totalorder %s50, 1
        %s1061 = scalar_select %p1060, %s50, 1
        %s1062 = scalar_lea.vmem %s13, %s1061
        %p1063 = scmp.lt.s32.totalorder %s50, 1
        %s1064 = scalar_select %p1063, %s50, 1
        %s1065 = scalar_lea.vmem %s14, %s1064
        %p1066 = scmp.lt.s32.totalorder %s50, 1
        %s1067 = scalar_select %p1066, %s50, 1
        %s1068 = scalar_lea.vmem %s15, %s1067
        %p1070 = scmp.eq.s32.totalorder %s50, 0
        // Predicated region
        $region137: #{tpu_custom_call.1} parent=91 // pred_check
          %p1071 = pneg %p1070
        $region138: #{tpu_custom_call.1} parent=91 // pred_check_branch
          %1073 = sbr.rel (%p1071) target = $region140
        $region139: #{tpu_custom_call.1} parent=91 // pred_region
          %v1074 = vld [vmem:[%s848] sm:$0xff]
          %v1075 = vld [vmem:[#allocation9] sm:$0x1]
          %v1076 = vld [vmem:[#allocation10] sm:$0x1]
          %1077 = vadd.xlane.f32.xlu0 %v1074
          %v1078 = vpop.xlane.xlu0 %1077
          %v1079 = vrcp.pop 128.0
          %v1080 = vmul.f32 128.0, %v1079
          %v1081 = vsub.f32 1.0, %v1080
          %v1082 = vmul.f32 %v1079, %v1081
          %v1083 = vadd.f32 %v1079, %v1082
          %vm1084 = vweird.f32 %v1079
          %v1085 = vsel %vm1084, %v1079, %v1083
          %v1086 = vmul.f32 %v1078, %v1085
          %v1087 = vsub.f32 %v1074, %v1086
          %v1088 = vmul.f32 %v1087, %v1087
          %1089 = vadd.xlane.f32.xlu0 %v1088
          %v1090 = vpop.xlane.xlu0 %1089
          %v1091 = vmul.f32 %v1090, %v1085
          %v1092 = vadd.f32 %v1091, 1e-05
          %v1093 = vrsqrt.pop %v1092
          %v1094 = vmul.f32 %v1093, %v1092
          %v1095 = vmul.f32 %v1094, %v1093
          %v1096 = vmul.f32 0.5, %v1095
          %v1097 = vsub.f32 1.5, %v1096
          %v1098 = vmul.f32 %v1093, %v1097
          %vm1099 = vweird.f32 %v1092
          %vm1100 = vweird.f32 %v1093
          %vm1101 = vmor %vm1099, %vm1100
          %v1102 = vsel %vm1101, %v1093, %v1098
          %v1103 = vmul.f32 %v1087, %v1102
          %v1105 = vperm.slane %v1075, 0
          %v1107 = vmul.f32 %v1103, %v1105
          %v1109 = vperm.slane %v1076, 0
          %v1111 = vadd.f32 %v1107, %v1109
          %1112 = vst [vmem:[%s1036] sm:$0xff] %v1111
          %1113 = vst [vmem:[#allocation2] sm:$0xff] %v1111
        $region140: #{tpu_custom_call.1} parent=91 // pred_fallthru
          _
        %v1114 = vld [vmem:[#allocation2] sm:$0xff]
        %v1115 = vpack.c.bf16 %v1114, %v1114
        %v1116 = vld [vmem:[%s857] sm:$0x1]
        %v1117 = vld [vmem:[%s877] sm:$0xff]
        %v1118 = vld [vmem:[%s877 + $0x8] sm:$0xf]
        %v1119 = vld [vmem:[%s877 + $0xc] sm:$0xff]
        %v1120 = vld [vmem:[%s877 + $0x14] sm:$0xf]
        %v1121 = vld [vmem:[%s877 + $0x18] sm:$0xff]
        %v1122 = vld [vmem:[%s877 + $0x20] sm:$0xf]
        %v1123 = vld [vmem:[%s877 + $0x24] sm:$0xff]
        %v1124 = vld [vmem:[%s877 + $0x2c] sm:$0xf]
        %v1125 = vld [vmem:[%s877 + $0x30] sm:$0xff]
        %v1126 = vld [vmem:[%s877 + $0x38] sm:$0xf]
        %v1127 = vld [vmem:[%s877 + $0x3c] sm:$0xff]
        %v1128 = vld [vmem:[%s877 + $0x44] sm:$0xf]
        %v1129 = vld [vmem:[%s877 + $0x48] sm:$0xff]
        %v1130 = vld [vmem:[%s877 + $0x50] sm:$0xf]
        %v1131 = vld [vmem:[%s877 + $0x54] sm:$0xff]
        %v1132 = vld [vmem:[%s877 + $0x5c] sm:$0xf]
        %v1133 = vld [vmem:[%s877 + $0x60] sm:$0xff]
        %v1134 = vld [vmem:[%s877 + $0x68] sm:$0xf]
        %v1135 = vld [vmem:[%s877 + $0x6c] sm:$0xff]
        %v1136 = vld [vmem:[%s877 + $0x74] sm:$0xf]
        %v1137 = vld [vmem:[%s877 + $0x78] sm:$0xff]
        %v1138 = vld [vmem:[%s877 + $0x80] sm:$0xf]
        %v1139 = vld [vmem:[%s877 + $0x84] sm:$0xff]
        %v1140 = vld [vmem:[%s877 + $0x8c] sm:$0xf]
        %v1141 = vld [vmem:[%s877 + $0x90] sm:$0xff]
        %v1142 = vld [vmem:[%s877 + $0x98] sm:$0xf]
        %v1143 = vld [vmem:[%s877 + $0x9c] sm:$0xff]
        %v1144 = vld [vmem:[%s877 + $0xa4] sm:$0xf]
        %v1145 = vld [vmem:[%s877 + $0xa8] sm:$0xff]
        %v1146 = vld [vmem:[%s877 + $0xb0] sm:$0xf]
        %v1147 = vld [vmem:[%s877 + $0xb4] sm:$0xff]
        %v1148 = vld [vmem:[%s877 + $0xbc] sm:$0xf]
        %v1149 = vld [vmem:[%s887] sm:$0x7]
        %v1151 = vperm.slane %v1149, 0
        %v1152 = vperm.slane %v1149, 1
        %v1153 = vperm.slane %v1149, 2
        %v1189 = vunpack.c.l.b16 %v1117
        %v1190 = vunpack.c.h.b16 %v1117
        %v1191 = vunpack.c.l.b16 %v1118
        %v1192 = vunpack.c.l.b16 %v1119
        %v1193 = vunpack.c.h.b16 %v1119
        %v1194 = vunpack.c.l.b16 %v1120
        %v1195 = vunpack.c.l.b16 %v1121
        %v1196 = vunpack.c.h.b16 %v1121
        %v1197 = vunpack.c.l.b16 %v1122
        %v1198 = vunpack.c.l.b16 %v1123
        %v1199 = vunpack.c.h.b16 %v1123
        %v1200 = vunpack.c.l.b16 %v1124
        %v1201 = vunpack.c.l.b16 %v1125
        %v1202 = vunpack.c.h.b16 %v1125
        %v1203 = vunpack.c.l.b16 %v1126
        %v1204 = vunpack.c.l.b16 %v1127
        %v1205 = vunpack.c.h.b16 %v1127
        %v1206 = vunpack.c.l.b16 %v1128
        %v1207 = vunpack.c.l.b16 %v1129
        %v1208 = vunpack.c.h.b16 %v1129
        %v1209 = vunpack.c.l.b16 %v1130
        %v1210 = vunpack.c.l.b16 %v1131
        %v1211 = vunpack.c.h.b16 %v1131
        %v1212 = vunpack.c.l.b16 %v1132
        %v1213 = vunpack.c.l.b16 %v1133
        %v1214 = vunpack.c.h.b16 %v1133
        %v1215 = vunpack.c.l.b16 %v1134
        %v1216 = vunpack.c.l.b16 %v1135
        %v1217 = vunpack.c.h.b16 %v1135
        %v1218 = vunpack.c.l.b16 %v1136
        %v1219 = vunpack.c.l.b16 %v1137
        %v1220 = vunpack.c.h.b16 %v1137
        %v1221 = vunpack.c.l.b16 %v1138
        %v1222 = vunpack.c.l.b16 %v1139
        %v1223 = vunpack.c.h.b16 %v1139
        %v1224 = vunpack.c.l.b16 %v1140
        %v1225 = vunpack.c.l.b16 %v1141
        %v1226 = vunpack.c.h.b16 %v1141
        %v1227 = vunpack.c.l.b16 %v1142
        %v1228 = vunpack.c.l.b16 %v1143
        %v1229 = vunpack.c.h.b16 %v1143
        %v1230 = vunpack.c.l.b16 %v1144
        %v1231 = vunpack.c.l.b16 %v1145
        %v1232 = vunpack.c.h.b16 %v1145
        %v1233 = vunpack.c.l.b16 %v1146
        %v1234 = vunpack.c.l.b16 %v1147
        %v1235 = vunpack.c.h.b16 %v1147
        %v1236 = vunpack.c.l.b16 %v1148
        %v1237 = vpack.c.b16 %v1192, %v1189
        %v1238 = vpack.c.b16 %v1193, %v1190
        %v1239 = vpack.c.b16 %v1194, %v1191
        %v1240 = vpack.c.b16 %v1198, %v1195
        %v1241 = vpack.c.b16 %v1199, %v1196
        %v1242 = vpack.c.b16 %v1200, %v1197
        %v1243 = vpack.c.b16 %v1204, %v1201
        %v1244 = vpack.c.b16 %v1205, %v1202
        %v1245 = vpack.c.b16 %v1206, %v1203
        %v1246 = vpack.c.b16 %v1210, %v1207
        %v1247 = vpack.c.b16 %v1211, %v1208
        %v1248 = vpack.c.b16 %v1212, %v1209
        %v1249 = vpack.c.b16 %v1216, %v1213
        %v1250 = vpack.c.b16 %v1217, %v1214
        %v1251 = vpack.c.b16 %v1218, %v1215
        %v1252 = vpack.c.b16 %v1222, %v1219
        %v1253 = vpack.c.b16 %v1223, %v1220
        %v1254 = vpack.c.b16 %v1224, %v1221
        %v1255 = vpack.c.b16 %v1228, %v1225
        %v1256 = vpack.c.b16 %v1229, %v1226
        %v1257 = vpack.c.b16 %v1230, %v1227
        %v1258 = vpack.c.b16 %v1234, %v1231
        %v1259 = vpack.c.b16 %v1235, %v1232
        %v1260 = vpack.c.b16 %v1236, %v1233
        %1285 = vmatpush.bf16.msra.mxu0 %v1258
        %1286 = vmatpush.bf16.msra.mxu0 %v1255
        %1287 = vmatpush.bf16.msra.mxu0 %v1252
        %1288 = vmatpush.bf16.msra.mxu0 %v1249
        %1289 = vmatpush.bf16.msra.mxu0 %v1246
        %1290 = vmatpush.bf16.msra.mxu0 %v1243
        %1291 = vmatpush.bf16.msra.mxu0 %v1240
        %1292 = vmatpush.bf16.msra.mxu0 %v1237
        %1293 = vmatmul.bf16.gmra.mxu0 %v1115
        %v1294 = vpop.f32.mrf.mxu0
        %v1295 = vadd.f32 %v1151, %v1294
        %v1296 = vpop.f32.mrf.mxu0
        %1297 = vdwg.mxu0
        %1298 = vmatpush.bf16.msra.mxu0 %v1259
        %1299 = vmatpush.bf16.msra.mxu0 %v1256
        %1300 = vmatpush.bf16.msra.mxu0 %v1253
        %1301 = vmatpush.bf16.msra.mxu0 %v1250
        %1302 = vmatpush.bf16.msra.mxu0 %v1247
        %1303 = vmatpush.bf16.msra.mxu0 %v1244
        %1304 = vmatpush.bf16.msra.mxu0 %v1241
        %1305 = vmatpush.bf16.msra.mxu0 %v1238
        %1306 = vmatmul.bf16.gmra.mxu0 %v1115
        %v1307 = vpop.f32.mrf.mxu0
        %v1308 = vadd.f32 %v1152, %v1307
        %v1309 = vpop.f32.mrf.mxu0
        %1310 = vdwg.mxu0
        %1311 = vmatpush.bf16.msra.mxu0 %v1260
        %1312 = vmatpush.bf16.msra.mxu0 %v1257
        %1313 = vmatpush.bf16.msra.mxu0 %v1254
        %1314 = vmatpush.bf16.msra.mxu0 %v1251
        %1315 = vmatpush.bf16.msra.mxu0 %v1248
        %1316 = vmatpush.bf16.msra.mxu0 %v1245
        %1317 = vmatpush.bf16.msra.mxu0 %v1242
        %1318 = vmatpush.bf16.msra.mxu0 %v1239
        %1319 = vmatmul.bf16.gmra.mxu0 %v1115
        %v1320 = vpop.f32.mrf.mxu0
        %v1321 = vadd.f32 %v1153, %v1320
        %v1322 = vpop.f32.mrf.mxu0
        %1323 = vdwg.mxu0
        %v1324 = vpack.c.bf16 %v1308, %v1295
        %v1325 = vpack.c.bf16 %v1321, %v1321
        %v1327 = vperm.slane %v1116, 0
        %v1330 = vunpack.c.h.b16 %v1324
        %v1331 = vpack.c.b16 %v1330, %v1330
        %vm1332 = vcmask 261120
        %v1334 = vsel %vm1332, %v1324, 0
        %v1337 = vsel %vm1332, %v1331, 0
        %1339 = vmatpush.bf16.xpose.msra.mxu0 0
        %1340 = vmatpush.bf16.xpose.msra.mxu0 0
        %1341 = vmatpush.bf16.xpose.msra.mxu0 0
        %1342 = vmatpush.bf16.xpose.msra.mxu0 0
        %1343 = vmatpush.bf16.xpose.msra.mxu0 0
        %1344 = vmatpush.bf16.xpose.msra.mxu0 0
        %1345 = vmatpush.bf16.xpose.msra.mxu0 0
        %1346 = vmatpush.bf16.xpose.msra.mxu0 %v1337
        %1347 = vmatmul.bf16.gmra.mxu0 %v1334
        %v1348 = vpop.f32.mrf.mxu0
        %v1349 = vadd.f32 %v1327, %v1348
        %v1350 = vpop.f32.mrf.mxu0
        %1351 = vdwg.mxu0
        %vm1352 = vcmask 64512
        %v1353 = vsel %vm1352, %v1349, -inf
        %1354 = vmax.xlane.f32.xlu0 %v1353
        %v1355 = vpop.xlane.xlu0 %1354
        %v1356 = vsub.f32 %v1349, %v1355
        %v1357 = vmul.f32 %v1356, 1.442695
        %v1358 = vpow.pop %v1357
        %v1359 = vsel %vm1352, %v1358, 0.0
        %1360 = vadd.xlane.f32.xlu0 %v1359
        %v1361 = vpop.xlane.xlu0 %1360
        %v1362 = vrcp.pop %v1361
        %v1363 = vmul.f32 %v1358, %v1362
        %v1364 = vpack.c.bf16 %v1363, %v1363
        %v1366 = vsel %vm1352, %v1364, 0
        %vm1368 = vcmask 1043456
        %v1370 = vsel %vm1368, %v1325, 0
        %1372 = vmatpush.bf16.msra.mxu0 0
        %1373 = vmatpush.bf16.msra.mxu0 0
        %1374 = vmatpush.bf16.msra.mxu0 0
        %1375 = vmatpush.bf16.msra.mxu0 0
        %1376 = vmatpush.bf16.msra.mxu0 0
        %1377 = vmatpush.bf16.msra.mxu0 0
        %1378 = vmatpush.bf16.msra.mxu0 0
        %1379 = vmatpush.bf16.msra.mxu0 %v1370
        %1380 = vmatmul.bf16.gmra.mxu0 %v1366
        %v1381 = vpop.f32.mrf.mxu0
        %v1382 = vadd.f32 0.0, %v1381
        %v1383 = vpop.f32.mrf.mxu0
        %1384 = vdwg.mxu0
        %1385 = vst.msk [vmem:[#allocation3] sm:$0xff] %vm1332, %v1382
        %v1386 = vunpack.c.l.b16 %v1324
        %v1387 = vpack.c.b16 %v1386, %v1386
        %1388 = vrot.lane.b32.xlu0 %v1387, 96
        %v1389 = vpop.permute.xlu0 %1388
        %1390 = vrot.lane.b32.xlu0 %v1331, 96
        %v1391 = vpop.permute.xlu0 %1390
        %v1393 = vsel %vm1332, %v1389, 0
        %v1396 = vsel %vm1332, %v1391, 0
        %1398 = vmatpush.bf16.xpose.msra.mxu0 0
        %1399 = vmatpush.bf16.xpose.msra.mxu0 0
        %1400 = vmatpush.bf16.xpose.msra.mxu0 0
        %1401 = vmatpush.bf16.xpose.msra.mxu0 0
        %1402 = vmatpush.bf16.xpose.msra.mxu0 0
        %1403 = vmatpush.bf16.xpose.msra.mxu0 0
        %1404 = vmatpush.bf16.xpose.msra.mxu0 0
        %1405 = vmatpush.bf16.xpose.msra.mxu0 %v1396
        %1406 = vmatmul.bf16.gmra.mxu0 %v1393
        %v1407 = vpop.f32.mrf.mxu0
        %v1408 = vadd.f32 %v1327, %v1407
        %v1409 = vpop.f32.mrf.mxu0
        %1410 = vdwg.mxu0
        %v1411 = vsel %vm1352, %v1408, -inf
        %1412 = vmax.xlane.f32.xlu0 %v1411
        %v1413 = vpop.xlane.xlu0 %1412
        %v1414 = vsub.f32 %v1408, %v1413
        %v1415 = vmul.f32 %v1414, 1.442695
        %v1416 = vpow.pop %v1415
        %v1417 = vsel %vm1352, %v1416, 0.0
        %1418 = vadd.xlane.f32.xlu0 %v1417
        %v1419 = vpop.xlane.xlu0 %1418
        %v1420 = vrcp.pop %v1419
        %v1421 = vmul.f32 %v1416, %v1420
        %v1422 = vpack.c.bf16 %v1421, %v1421
        %v1424 = vunpack.c.l.b16 %v1325
        %v1425 = vpack.c.b16 %v1424, %v1424
        %1426 = vrot.lane.b32.xlu0 %v1425, 96
        %v1427 = vpop.permute.xlu0 %1426
        %v1429 = vsel %vm1352, %v1422, 0
        %v1432 = vsel %vm1368, %v1427, 0
        %1434 = vmatpush.bf16.msra.mxu0 0
        %1435 = vmatpush.bf16.msra.mxu0 0
        %1436 = vmatpush.bf16.msra.mxu0 0
        %1437 = vmatpush.bf16.msra.mxu0 0
        %1438 = vmatpush.bf16.msra.mxu0 0
        %1439 = vmatpush.bf16.msra.mxu0 0
        %1440 = vmatpush.bf16.msra.mxu0 0
        %1441 = vmatpush.bf16.msra.mxu0 %v1432
        %1442 = vmatmul.bf16.gmra.mxu0 %v1429
        %v1443 = vpop.f32.mrf.mxu0
        %v1444 = vadd.f32 0.0, %v1443
        %v1445 = vpop.f32.mrf.mxu0
        %1446 = vdwg.mxu0
        %1448 = vrot.lane.b32.xlu0 %v1444, 32
        %v1449 = vpop.permute.xlu0 %1448
        %vm1451 = vcmask 523520
        %1452 = vst.msk [vmem:[#allocation3] sm:$0xff] %vm1451, %v1449
        %1453 = vrot.lane.b32.xlu0 %v1387, 64
        %v1454 = vpop.permute.xlu0 %1453
        %1455 = vrot.lane.b32.xlu0 %v1331, 64
        %v1456 = vpop.permute.xlu0 %1455
        %v1458 = vsel %vm1332, %v1454, 0
        %v1461 = vsel %vm1332, %v1456, 0
        %1463 = vmatpush.bf16.xpose.msra.mxu0 0
        %1464 = vmatpush.bf16.xpose.msra.mxu0 0
        %1465 = vmatpush.bf16.xpose.msra.mxu0 0
        %1466 = vmatpush.bf16.xpose.msra.mxu0 0
        %1467 = vmatpush.bf16.xpose.msra.mxu0 0
        %1468 = vmatpush.bf16.xpose.msra.mxu0 0
        %1469 = vmatpush.bf16.xpose.msra.mxu0 0
        %1470 = vmatpush.bf16.xpose.msra.mxu0 %v1461
        %1471 = vmatmul.bf16.gmra.mxu0 %v1458
        %v1472 = vpop.f32.mrf.mxu0
        %v1473 = vadd.f32 %v1327, %v1472
        %v1474 = vpop.f32.mrf.mxu0
        %1475 = vdwg.mxu0
        %v1476 = vsel %vm1352, %v1473, -inf
        %1477 = vmax.xlane.f32.xlu0 %v1476
        %v1478 = vpop.xlane.xlu0 %1477
        %v1479 = vsub.f32 %v1473, %v1478
        %v1480 = vmul.f32 %v1479, 1.442695
        %v1481 = vpow.pop %v1480
        %v1482 = vsel %vm1352, %v1481, 0.0
        %1483 = vadd.xlane.f32.xlu0 %v1482
        %v1484 = vpop.xlane.xlu0 %1483
        %v1485 = vrcp.pop %v1484
        %v1486 = vmul.f32 %v1481, %v1485
        %v1487 = vpack.c.bf16 %v1486, %v1486
        %1488 = vrot.lane.b32.xlu0 %v1425, 64
        %v1489 = vpop.permute.xlu0 %1488
        %v1491 = vsel %vm1352, %v1487, 0
        %v1494 = vsel %vm1368, %v1489, 0
        %1496 = vmatpush.bf16.msra.mxu0 0
        %1497 = vmatpush.bf16.msra.mxu0 0
        %1498 = vmatpush.bf16.msra.mxu0 0
        %1499 = vmatpush.bf16.msra.mxu0 0
        %1500 = vmatpush.bf16.msra.mxu0 0
        %1501 = vmatpush.bf16.msra.mxu0 0
        %1502 = vmatpush.bf16.msra.mxu0 0
        %1503 = vmatpush.bf16.msra.mxu0 %v1494
        %1504 = vmatmul.bf16.gmra.mxu0 %v1491
        %v1505 = vpop.f32.mrf.mxu0
        %v1506 = vadd.f32 0.0, %v1505
        %v1507 = vpop.f32.mrf.mxu0
        %1508 = vdwg.mxu0
        %1510 = vrot.lane.b32.xlu0 %v1506, 64
        %v1511 = vpop.permute.xlu0 %1510
        %vm1513 = vcmask 785920
        %1514 = vst.msk [vmem:[#allocation3] sm:$0xff] %vm1513, %v1511
        %1515 = vrot.lane.b32.xlu0 %v1387, 32
        %v1516 = vpop.permute.xlu0 %1515
        %1517 = vrot.lane.b32.xlu0 %v1331, 32
        %v1518 = vpop.permute.xlu0 %1517
        %v1520 = vsel %vm1332, %v1516, 0
        %v1523 = vsel %vm1332, %v1518, 0
        %1525 = vmatpush.bf16.xpose.msra.mxu0 0
        %1526 = vmatpush.bf16.xpose.msra.mxu0 0
        %1527 = vmatpush.bf16.xpose.msra.mxu0 0
        %1528 = vmatpush.bf16.xpose.msra.mxu0 0
        %1529 = vmatpush.bf16.xpose.msra.mxu0 0
        %1530 = vmatpush.bf16.xpose.msra.mxu0 0
        %1531 = vmatpush.bf16.xpose.msra.mxu0 0
        %1532 = vmatpush.bf16.xpose.msra.mxu0 %v1523
        %1533 = vmatmul.bf16.gmra.mxu0 %v1520
        %v1534 = vpop.f32.mrf.mxu0
        %v1535 = vadd.f32 %v1327, %v1534
        %v1536 = vpop.f32.mrf.mxu0
        %1537 = vdwg.mxu0
        %v1538 = vsel %vm1352, %v1535, -inf
        %1539 = vmax.xlane.f32.xlu0 %v1538
        %v1540 = vpop.xlane.xlu0 %1539
        %v1541 = vsub.f32 %v1535, %v1540
        %v1542 = vmul.f32 %v1541, 1.442695
        %v1543 = vpow.pop %v1542
        %v1544 = vsel %vm1352, %v1543, 0.0
        %1545 = vadd.xlane.f32.xlu0 %v1544
        %v1546 = vpop.xlane.xlu0 %1545
        %v1547 = vrcp.pop %v1546
        %v1548 = vmul.f32 %v1543, %v1547
        %v1549 = vpack.c.bf16 %v1548, %v1548
        %1550 = vrot.lane.b32.xlu0 %v1425, 32
        %v1551 = vpop.permute.xlu0 %1550
        %v1553 = vsel %vm1352, %v1549, 0
        %v1556 = vsel %vm1368, %v1551, 0
        %1558 = vmatpush.bf16.msra.mxu0 0
        %1559 = vmatpush.bf16.msra.mxu0 0
        %1560 = vmatpush.bf16.msra.mxu0 0
        %1561 = vmatpush.bf16.msra.mxu0 0
        %1562 = vmatpush.bf16.msra.mxu0 0
        %1563 = vmatpush.bf16.msra.mxu0 0
        %1564 = vmatpush.bf16.msra.mxu0 0
        %1565 = vmatpush.bf16.msra.mxu0 %v1556
        %1566 = vmatmul.bf16.gmra.mxu0 %v1553
        %v1567 = vpop.f32.mrf.mxu0
        %v1568 = vadd.f32 0.0, %v1567
        %v1569 = vpop.f32.mrf.mxu0
        %1570 = vdwg.mxu0
        %1572 = vrot.lane.b32.xlu0 %v1568, 96
        %v1573 = vpop.permute.xlu0 %1572
        %vm1575 = vcmask 1048320
        %1576 = vst.msk [vmem:[#allocation3] sm:$0xff] %vm1575, %v1573
        %v1577 = vld [vmem:[#allocation3] sm:$0xff]
        %v1578 = vpack.c.bf16 %v1577, %v1577
        %v1579 = vld [vmem:[%s897] sm:$0xf]
        %v1580 = vld [vmem:[%s897 + $0x4] sm:$0xf]
        %v1581 = vld [vmem:[%s897 + $0x8] sm:$0xf]
        %v1582 = vld [vmem:[%s897 + $0xc] sm:$0xf]
        %v1583 = vld [vmem:[%s897 + $0x10] sm:$0xf]
        %v1584 = vld [vmem:[%s897 + $0x14] sm:$0xf]
        %v1585 = vld [vmem:[%s897 + $0x18] sm:$0xf]
        %v1586 = vld [vmem:[%s897 + $0x1c] sm:$0xf]
        %v1587 = vld [vmem:[%s897 + $0x20] sm:$0xf]
        %v1588 = vld [vmem:[%s897 + $0x24] sm:$0xf]
        %v1589 = vld [vmem:[%s897 + $0x28] sm:$0xf]
        %v1590 = vld [vmem:[%s897 + $0x2c] sm:$0xf]
        %v1591 = vld [vmem:[%s897 + $0x30] sm:$0xf]
        %v1592 = vld [vmem:[%s897 + $0x34] sm:$0xf]
        %v1593 = vld [vmem:[%s897 + $0x38] sm:$0xf]
        %v1594 = vld [vmem:[%s897 + $0x3c] sm:$0xf]
        %v1595 = vld [vmem:[%s1052] sm:$0x1]
        %v1597 = vperm.slane %v1595, 0
        %v1615 = vunpack.c.l.b16 %v1579
        %v1616 = vunpack.c.l.b16 %v1580
        %v1617 = vunpack.c.l.b16 %v1581
        %v1618 = vunpack.c.l.b16 %v1582
        %v1619 = vunpack.c.l.b16 %v1583
        %v1620 = vunpack.c.l.b16 %v1584
        %v1621 = vunpack.c.l.b16 %v1585
        %v1622 = vunpack.c.l.b16 %v1586
        %v1623 = vunpack.c.l.b16 %v1587
        %v1624 = vunpack.c.l.b16 %v1588
        %v1625 = vunpack.c.l.b16 %v1589
        %v1626 = vunpack.c.l.b16 %v1590
        %v1627 = vunpack.c.l.b16 %v1591
        %v1628 = vunpack.c.l.b16 %v1592
        %v1629 = vunpack.c.l.b16 %v1593
        %v1630 = vunpack.c.l.b16 %v1594
        %v1631 = vpack.c.b16 %v1616, %v1615
        %v1632 = vpack.c.b16 %v1618, %v1617
        %v1633 = vpack.c.b16 %v1620, %v1619
        %v1634 = vpack.c.b16 %v1622, %v1621
        %v1635 = vpack.c.b16 %v1624, %v1623
        %v1636 = vpack.c.b16 %v1626, %v1625
        %v1637 = vpack.c.b16 %v1628, %v1627
        %v1638 = vpack.c.b16 %v1630, %v1629
        %1647 = vmatpush.bf16.msra.mxu0 %v1638
        %1648 = vmatpush.bf16.msra.mxu0 %v1637
        %1649 = vmatpush.bf16.msra.mxu0 %v1636
        %1650 = vmatpush.bf16.msra.mxu0 %v1635
        %1651 = vmatpush.bf16.msra.mxu0 %v1634
        %1652 = vmatpush.bf16.msra.mxu0 %v1633
        %1653 = vmatpush.bf16.msra.mxu0 %v1632
        %1654 = vmatpush.bf16.msra.mxu0 %v1631
        %1655 = vmatmul.bf16.gmra.mxu0 %v1578
        %v1656 = vpop.f32.mrf.mxu0
        %v1657 = vadd.f32 %v1597, %v1656
        %v1658 = vpop.f32.mrf.mxu0
        %1659 = vdwg.mxu0
        %v1660 = vadd.f32 %v1657, %v1114
        %v1661 = vld [vmem:[%s906] sm:$0x1]
        %v1662 = vld [vmem:[%s1055] sm:$0x1]
        %1663 = vadd.xlane.f32.xlu0 %v1660
        %v1664 = vpop.xlane.xlu0 %1663
        %v1665 = vrcp.pop 128.0
        %v1666 = vmul.f32 128.0, %v1665
        %v1667 = vsub.f32 1.0, %v1666
        %v1668 = vmul.f32 %v1665, %v1667
        %v1669 = vadd.f32 %v1665, %v1668
        %vm1670 = vweird.f32 %v1665
        %v1671 = vsel %vm1670, %v1665, %v1669
        %v1672 = vmul.f32 %v1664, %v1671
        %v1673 = vsub.f32 %v1660, %v1672
        %v1674 = vmul.f32 %v1673, %v1673
        %1675 = vadd.xlane.f32.xlu0 %v1674
        %v1676 = vpop.xlane.xlu0 %1675
        %v1677 = vmul.f32 %v1676, %v1671
        %v1678 = vadd.f32 %v1677, 1e-05
        %v1679 = vrsqrt.pop %v1678
        %v1680 = vmul.f32 %v1679, %v1678
        %v1681 = vmul.f32 %v1680, %v1679
        %v1682 = vmul.f32 0.5, %v1681
        %v1683 = vsub.f32 1.5, %v1682
        %v1684 = vmul.f32 %v1679, %v1683
        %vm1685 = vweird.f32 %v1678
        %vm1686 = vweird.f32 %v1679
        %vm1687 = vmor %vm1685, %vm1686
        %v1688 = vsel %vm1687, %v1679, %v1684
        %v1689 = vmul.f32 %v1673, %v1688
        %v1691 = vperm.slane %v1661, 0
        %v1693 = vmul.f32 %v1689, %v1691
        %v1695 = vperm.slane %v1662, 0
        %v1697 = vadd.f32 %v1693, %v1695
        %v1698 = vpack.c.bf16 %v1697, %v1697
        %v1699 = vld [vmem:[%s916] sm:$0xff]
        %v1700 = vld [vmem:[%s916 + $0x8] sm:$0xff]
        %v1701 = vld [vmem:[%s916 + $0x10] sm:$0xff]
        %v1702 = vld [vmem:[%s916 + $0x18] sm:$0xff]
        %v1703 = vld [vmem:[%s916 + $0x20] sm:$0xff]
        %v1704 = vld [vmem:[%s916 + $0x28] sm:$0xff]
        %v1705 = vld [vmem:[%s916 + $0x30] sm:$0xff]
        %v1706 = vld [vmem:[%s916 + $0x38] sm:$0xff]
        %v1707 = vld [vmem:[%s916 + $0x40] sm:$0xff]
        %v1708 = vld [vmem:[%s916 + $0x48] sm:$0xff]
        %v1709 = vld [vmem:[%s916 + $0x50] sm:$0xff]
        %v1710 = vld [vmem:[%s916 + $0x58] sm:$0xff]
        %v1711 = vld [vmem:[%s916 + $0x60] sm:$0xff]
        %v1712 = vld [vmem:[%s916 + $0x68] sm:$0xff]
        %v1713 = vld [vmem:[%s916 + $0x70] sm:$0xff]
        %v1714 = vld [vmem:[%s916 + $0x78] sm:$0xff]
        %v1715 = vld [vmem:[%s1059] sm:$0x3]
        %v1717 = vperm.slane %v1715, 0
        %v1718 = vperm.slane %v1715, 1
        %v1737 = vunpack.c.l.b16 %v1699
        %v1738 = vunpack.c.h.b16 %v1699
        %v1739 = vunpack.c.l.b16 %v1700
        %v1740 = vunpack.c.h.b16 %v1700
        %v1741 = vunpack.c.l.b16 %v1701
        %v1742 = vunpack.c.h.b16 %v1701
        %v1743 = vunpack.c.l.b16 %v1702
        %v1744 = vunpack.c.h.b16 %v1702
        %v1745 = vunpack.c.l.b16 %v1703
        %v1746 = vunpack.c.h.b16 %v1703
        %v1747 = vunpack.c.l.b16 %v1704
        %v1748 = vunpack.c.h.b16 %v1704
        %v1749 = vunpack.c.l.b16 %v1705
        %v1750 = vunpack.c.h.b16 %v1705
        %v1751 = vunpack.c.l.b16 %v1706
        %v1752 = vunpack.c.h.b16 %v1706
        %v1753 = vunpack.c.l.b16 %v1707
        %v1754 = vunpack.c.h.b16 %v1707
        %v1755 = vunpack.c.l.b16 %v1708
        %v1756 = vunpack.c.h.b16 %v1708
        %v1757 = vunpack.c.l.b16 %v1709
        %v1758 = vunpack.c.h.b16 %v1709
        %v1759 = vunpack.c.l.b16 %v1710
        %v1760 = vunpack.c.h.b16 %v1710
        %v1761 = vunpack.c.l.b16 %v1711
        %v1762 = vunpack.c.h.b16 %v1711
        %v1763 = vunpack.c.l.b16 %v1712
        %v1764 = vunpack.c.h.b16 %v1712
        %v1765 = vunpack.c.l.b16 %v1713
        %v1766 = vunpack.c.h.b16 %v1713
        %v1767 = vunpack.c.l.b16 %v1714
        %v1768 = vunpack.c.h.b16 %v1714
        %v1769 = vpack.c.b16 %v1739, %v1737
        %v1770 = vpack.c.b16 %v1740, %v1738
        %v1771 = vpack.c.b16 %v1743, %v1741
        %v1772 = vpack.c.b16 %v1744, %v1742
        %v1773 = vpack.c.b16 %v1747, %v1745
        %v1774 = vpack.c.b16 %v1748, %v1746
        %v1775 = vpack.c.b16 %v1751, %v1749
        %v1776 = vpack.c.b16 %v1752, %v1750
        %v1777 = vpack.c.b16 %v1755, %v1753
        %v1778 = vpack.c.b16 %v1756, %v1754
        %v1779 = vpack.c.b16 %v1759, %v1757
        %v1780 = vpack.c.b16 %v1760, %v1758
        %v1781 = vpack.c.b16 %v1763, %v1761
        %v1782 = vpack.c.b16 %v1764, %v1762
        %v1783 = vpack.c.b16 %v1767, %v1765
        %v1784 = vpack.c.b16 %v1768, %v1766
        %1801 = vmatpush.bf16.msra.mxu0 %v1783
        %1802 = vmatpush.bf16.msra.mxu0 %v1781
        %1803 = vmatpush.bf16.msra.mxu0 %v1779
        %1804 = vmatpush.bf16.msra.mxu0 %v1777
        %1805 = vmatpush.bf16.msra.mxu0 %v1775
        %1806 = vmatpush.bf16.msra.mxu0 %v1773
        %1807 = vmatpush.bf16.msra.mxu0 %v1771
        %1808 = vmatpush.bf16.msra.mxu0 %v1769
        %1809 = vmatmul.bf16.gmra.mxu0 %v1698
        %v1810 = vpop.f32.mrf.mxu0
        %v1811 = vadd.f32 %v1717, %v1810
        %v1812 = vpop.f32.mrf.mxu0
        %1813 = vdwg.mxu0
        %1814 = vmatpush.bf16.msra.mxu0 %v1784
        %1815 = vmatpush.bf16.msra.mxu0 %v1782
        %1816 = vmatpush.bf16.msra.mxu0 %v1780
        %1817 = vmatpush.bf16.msra.mxu0 %v1778
        %1818 = vmatpush.bf16.msra.mxu0 %v1776
        %1819 = vmatpush.bf16.msra.mxu0 %v1774
        %1820 = vmatpush.bf16.msra.mxu0 %v1772
        %1821 = vmatpush.bf16.msra.mxu0 %v1770
        %1822 = vmatmul.bf16.gmra.mxu0 %v1698
        %v1823 = vpop.f32.mrf.mxu0
        %v1824 = vadd.f32 %v1718, %v1823
        %v1825 = vpop.f32.mrf.mxu0
        %1826 = vdwg.mxu0
        %v1827 = vmul.f32 %v1811, 0.5
        %v1828 = vmul.f32 %v1824, 0.5
        %v1829 = vmul.f32 %v1811, 0.044715
        %v1830 = vmul.f32 %v1824, 0.044715
        %v1831 = vmul.f32 %v1829, %v1811
        %v1832 = vmul.f32 %v1830, %v1824
        %v1833 = vmul.f32 %v1831, %v1811
        %v1834 = vmul.f32 %v1832, %v1824
        %v1835 = vadd.f32 %v1811, %v1833
        %v1836 = vadd.f32 %v1824, %v1834
        %v1837 = vmul.f32 %v1835, 0.7978846
        %v1838 = vmul.f32 %v1836, 0.7978846
        %v1839 = vtanh.pop %v1837
        %v1840 = vtanh.pop %v1838
        %v1841 = vadd.f32 %v1839, 1.0
        %v1842 = vadd.f32 %v1840, 1.0
        %v1843 = vmul.f32 %v1827, %v1841
        %v1844 = vmul.f32 %v1828, %v1842
        %v1845 = vpack.c.bf16 %v1843, %v1843
        %v1846 = vpack.c.bf16 %v1844, %v1844
        %v1847 = vld [vmem:[%s926] sm:$0xf]
        %v1848 = vld [vmem:[%s926 + $0x4] sm:$0xf]
        %v1849 = vld [vmem:[%s926 + $0x8] sm:$0xf]
        %v1850 = vld [vmem:[%s926 + $0xc] sm:$0xf]
        %v1851 = vld [vmem:[%s926 + $0x10] sm:$0xf]
        %v1852 = vld [vmem:[%s926 + $0x14] sm:$0xf]
        %v1853 = vld [vmem:[%s926 + $0x18] sm:$0xf]
        %v1854 = vld [vmem:[%s926 + $0x1c] sm:$0xf]
        %v1855 = vld [vmem:[%s926 + $0x20] sm:$0xf]
        %v1856 = vld [vmem:[%s926 + $0x24] sm:$0xf]
        %v1857 = vld [vmem:[%s926 + $0x28] sm:$0xf]
        %v1858 = vld [vmem:[%s926 + $0x2c] sm:$0xf]
        %v1859 = vld [vmem:[%s926 + $0x30] sm:$0xf]
        %v1860 = vld [vmem:[%s926 + $0x34] sm:$0xf]
        %v1861 = vld [vmem:[%s926 + $0x38] sm:$0xf]
        %v1862 = vld [vmem:[%s926 + $0x3c] sm:$0xf]
        %v1863 = vld [vmem:[%s926 + $0x40] sm:$0xf]
        %v1864 = vld [vmem:[%s926 + $0x44] sm:$0xf]
        %v1865 = vld [vmem:[%s926 + $0x48] sm:$0xf]
        %v1866 = vld [vmem:[%s926 + $0x4c] sm:$0xf]
        %v1867 = vld [vmem:[%s926 + $0x50] sm:$0xf]
        %v1868 = vld [vmem:[%s926 + $0x54] sm:$0xf]
        %v1869 = vld [vmem:[%s926 + $0x58] sm:$0xf]
        %v1870 = vld [vmem:[%s926 + $0x5c] sm:$0xf]
        %v1871 = vld [vmem:[%s926 + $0x60] sm:$0xf]
        %v1872 = vld [vmem:[%s926 + $0x64] sm:$0xf]
        %v1873 = vld [vmem:[%s926 + $0x68] sm:$0xf]
        %v1874 = vld [vmem:[%s926 + $0x6c] sm:$0xf]
        %v1875 = vld [vmem:[%s926 + $0x70] sm:$0xf]
        %v1876 = vld [vmem:[%s926 + $0x74] sm:$0xf]
        %v1877 = vld [vmem:[%s926 + $0x78] sm:$0xf]
        %v1878 = vld [vmem:[%s926 + $0x7c] sm:$0xf]
        %v1879 = vld [vmem:[%s1062] sm:$0x1]
        %v1881 = vperm.slane %v1879, 0
        %v1915 = vunpack.c.l.b16 %v1847
        %v1916 = vunpack.c.l.b16 %v1848
        %v1917 = vunpack.c.l.b16 %v1849
        %v1918 = vunpack.c.l.b16 %v1850
        %v1919 = vunpack.c.l.b16 %v1851
        %v1920 = vunpack.c.l.b16 %v1852
        %v1921 = vunpack.c.l.b16 %v1853
        %v1922 = vunpack.c.l.b16 %v1854
        %v1923 = vunpack.c.l.b16 %v1855
        %v1924 = vunpack.c.l.b16 %v1856
        %v1925 = vunpack.c.l.b16 %v1857
        %v1926 = vunpack.c.l.b16 %v1858
        %v1927 = vunpack.c.l.b16 %v1859
        %v1928 = vunpack.c.l.b16 %v1860
        %v1929 = vunpack.c.l.b16 %v1861
        %v1930 = vunpack.c.l.b16 %v1862
        %v1931 = vunpack.c.l.b16 %v1863
        %v1932 = vunpack.c.l.b16 %v1864
        %v1933 = vunpack.c.l.b16 %v1865
        %v1934 = vunpack.c.l.b16 %v1866
        %v1935 = vunpack.c.l.b16 %v1867
        %v1936 = vunpack.c.l.b16 %v1868
        %v1937 = vunpack.c.l.b16 %v1869
        %v1938 = vunpack.c.l.b16 %v1870
        %v1939 = vunpack.c.l.b16 %v1871
        %v1940 = vunpack.c.l.b16 %v1872
        %v1941 = vunpack.c.l.b16 %v1873
        %v1942 = vunpack.c.l.b16 %v1874
        %v1943 = vunpack.c.l.b16 %v1875
        %v1944 = vunpack.c.l.b16 %v1876
        %v1945 = vunpack.c.l.b16 %v1877
        %v1946 = vunpack.c.l.b16 %v1878
        %v1947 = vpack.c.b16 %v1916, %v1915
        %v1948 = vpack.c.b16 %v1918, %v1917
        %v1949 = vpack.c.b16 %v1920, %v1919
        %v1950 = vpack.c.b16 %v1922, %v1921
        %v1951 = vpack.c.b16 %v1924, %v1923
        %v1952 = vpack.c.b16 %v1926, %v1925
        %v1953 = vpack.c.b16 %v1928, %v1927
        %v1954 = vpack.c.b16 %v1930, %v1929
        %v1955 = vpack.c.b16 %v1932, %v1931
        %v1956 = vpack.c.b16 %v1934, %v1933
        %v1957 = vpack.c.b16 %v1936, %v1935
        %v1958 = vpack.c.b16 %v1938, %v1937
        %v1959 = vpack.c.b16 %v1940, %v1939
        %v1960 = vpack.c.b16 %v1942, %v1941
        %v1961 = vpack.c.b16 %v1944, %v1943
        %v1962 = vpack.c.b16 %v1946, %v1945
        %1979 = vmatpush.bf16.msra.mxu0 %v1954
        %1980 = vmatpush.bf16.msra.mxu0 %v1953
        %1981 = vmatpush.bf16.msra.mxu0 %v1952
        %1982 = vmatpush.bf16.msra.mxu0 %v1951
        %1983 = vmatpush.bf16.msra.mxu0 %v1950
        %1984 = vmatpush.bf16.msra.mxu0 %v1949
        %1985 = vmatpush.bf16.msra.mxu0 %v1948
        %1986 = vmatpush.bf16.msra.mxu0 %v1947
        %1987 = vmatmul.bf16.gmra.mxu0 %v1845
        %v1988 = vpop.f32.mrf.mxu0
        %v1989 = vadd.f32 %v1881, %v1988
        %v1990 = vpop.f32.mrf.mxu0
        %1991 = vdwg.mxu0
        %1992 = vmatpush.bf16.msra.mxu0 %v1962
        %1993 = vmatpush.bf16.msra.mxu0 %v1961
        %1994 = vmatpush.bf16.msra.mxu0 %v1960
        %1995 = vmatpush.bf16.msra.mxu0 %v1959
        %1996 = vmatpush.bf16.msra.mxu0 %v1958
        %1997 = vmatpush.bf16.msra.mxu0 %v1957
        %1998 = vmatpush.bf16.msra.mxu0 %v1956
        %1999 = vmatpush.bf16.msra.mxu0 %v1955
        %2000 = vmatmul.bf16.gmra.mxu0 %v1846
        %v2001 = vpop.f32.mrf.mxu0
        %v2002 = vadd.f32 %v1989, %v2001
        %v2003 = vpop.f32.mrf.mxu0
        %2004 = vdwg.mxu0
        %v2005 = vadd.f32 %v2002, %v1697
        %v2006 = vld [vmem:[%s1065] sm:$0x1]
        %v2007 = vld [vmem:[%s1068] sm:$0x1]
        %2008 = vadd.xlane.f32.xlu0 %v2005
        %v2009 = vpop.xlane.xlu0 %2008
        %v2010 = vmul.f32 %v2009, %v1671
        %v2011 = vsub.f32 %v2005, %v2010
        %v2012 = vmul.f32 %v2011, %v2011
        %2013 = vadd.xlane.f32.xlu0 %v2012
        %v2014 = vpop.xlane.xlu0 %2013
        %v2015 = vmul.f32 %v2014, %v1671
        %v2016 = vadd.f32 %v2015, 1e-05
        %v2017 = vrsqrt.pop %v2016
        %v2018 = vmul.f32 %v2017, %v2016
        %v2019 = vmul.f32 %v2018, %v2017
        %v2020 = vmul.f32 0.5, %v2019
        %v2021 = vsub.f32 1.5, %v2020
        %v2022 = vmul.f32 %v2017, %v2021
        %vm2023 = vweird.f32 %v2016
        %vm2024 = vweird.f32 %v2017
        %vm2025 = vmor %vm2023, %vm2024
        %v2026 = vsel %vm2025, %v2017, %v2022
        %v2027 = vmul.f32 %v2011, %v2026
        %v2029 = vperm.slane %v2006, 0
        %v2031 = vmul.f32 %v2027, %v2029
        %v2033 = vperm.slane %v2007, 0
        %v2035 = vadd.f32 %v2031, %v2033
        %2036 = vst [vmem:[#allocation2] sm:$0xff] %v2035
        %2037 = vst [vmem:[%s1043] sm:$0xff] %v2035
        %p2038 = scmp.eq.s32.totalorder %s50, 1
        // Predicated region
        $region141: #{tpu_custom_call.1} parent=91 // pred_check
          %p2039 = pneg %p2038
        $region142: #{tpu_custom_call.1} parent=91 // pred_check_branch
          %2041 = sbr.rel (%p2039) target = $region144
        $region143: #{tpu_custom_call.1} parent=91 // pred_region
          %v2042 = vpack.c.bf16 %v2035, %v2035
          %v2043 = vld [vmem:[#allocation18] sm:$0xf]
          %v2044 = vld [vmem:[#allocation18 + $0x4] sm:$0xf]
          %v2045 = vld [vmem:[#allocation18 + $0x8] sm:$0xf]
          %v2046 = vld [vmem:[#allocation18 + $0xc] sm:$0xf]
          %v2047 = vld [vmem:[#allocation18 + $0x10] sm:$0xf]
          %v2048 = vld [vmem:[#allocation18 + $0x14] sm:$0xf]
          %v2049 = vld [vmem:[#allocation18 + $0x18] sm:$0xf]
          %v2050 = vld [vmem:[#allocation18 + $0x1c] sm:$0xf]
          %v2051 = vld [vmem:[#allocation18 + $0x20] sm:$0xf]
          %v2052 = vld [vmem:[#allocation18 + $0x24] sm:$0xf]
          %v2053 = vld [vmem:[#allocation18 + $0x28] sm:$0xf]
          %v2054 = vld [vmem:[#allocation18 + $0x2c] sm:$0xf]
          %v2055 = vld [vmem:[#allocation18 + $0x30] sm:$0xf]
          %v2056 = vld [vmem:[#allocation18 + $0x34] sm:$0xf]
          %v2057 = vld [vmem:[#allocation18 + $0x38] sm:$0xf]
          %v2058 = vld [vmem:[#allocation18 + $0x3c] sm:$0xf]
          %v2059 = vld [vmem:[%s17] sm:$0x1]
          %v2076 = vunpack.c.l.b16 %v2043
          %v2077 = vunpack.c.l.b16 %v2044
          %v2078 = vunpack.c.l.b16 %v2045
          %v2079 = vunpack.c.l.b16 %v2046
          %v2080 = vunpack.c.l.b16 %v2047
          %v2081 = vunpack.c.l.b16 %v2048
          %v2082 = vunpack.c.l.b16 %v2049
          %v2083 = vunpack.c.l.b16 %v2050
          %v2084 = vunpack.c.l.b16 %v2051
          %v2085 = vunpack.c.l.b16 %v2052
          %v2086 = vunpack.c.l.b16 %v2053
          %v2087 = vunpack.c.l.b16 %v2054
          %v2088 = vunpack.c.l.b16 %v2055
          %v2089 = vunpack.c.l.b16 %v2056
          %v2090 = vunpack.c.l.b16 %v2057
          %v2091 = vunpack.c.l.b16 %v2058
          %v2092 = vpack.c.b16 %v2077, %v2076
          %v2093 = vpack.c.b16 %v2079, %v2078
          %v2094 = vpack.c.b16 %v2081, %v2080
          %v2095 = vpack.c.b16 %v2083, %v2082
          %v2096 = vpack.c.b16 %v2085, %v2084
          %v2097 = vpack.c.b16 %v2087, %v2086
          %v2098 = vpack.c.b16 %v2089, %v2088
          %v2099 = vpack.c.b16 %v2091, %v2090
          %2108 = vmatpush.bf16.msra.mxu0 %v2099
          %2109 = vmatpush.bf16.msra.mxu0 %v2098
          %2110 = vmatpush.bf16.msra.mxu0 %v2097
          %2111 = vmatpush.bf16.msra.mxu0 %v2096
          %2112 = vmatpush.bf16.msra.mxu0 %v2095
          %2113 = vmatpush.bf16.msra.mxu0 %v2094
          %2114 = vmatpush.bf16.msra.mxu0 %v2093
          %2115 = vmatpush.bf16.msra.mxu0 %v2092
          %2116 = vmatmul.bf16.gmra.mxu0 %v2042
          %v2117 = vpop.f32.mrf.mxu0
          %v2118 = vadd.f32 %v2059, %v2117
          %v2119 = vpop.f32.mrf.mxu0
          %2120 = vdwg.mxu0
          %v2121 = vtanh.pop %v2118
          %2122 = vst [vmem:[%s1049] sm:$0x1] %v2121
        $region144: #{tpu_custom_call.1} parent=91 // pred_fallthru
          _
        %s2123 = sand.u32 %s513, 1
        %s2124 = scalar_lea.sflag [#allocation6], %s2123
        %s2125 = sand.u32 %s513, 1
        %s2126 = smul.addr %s2125, 8
        %s2127 = scalar_lea.vmem [#allocation19], %s2126
        %s2128 = sand.u32 %s45, 1
        %s2129 = scalar_lea.sflag [#allocation21], %s2128
        %s2130 = sand.u32 %s541, 1
        %s2131 = smul.addr %s2130, 8
        %s2132 = scalar_lea.vmem [#allocation20], %s2131
        %s2133 = sand.u32 %s45, 1
        %s2134 = scalar_lea.sflag [#allocation21], %s2133
        %s2135 = sand.u32 %s567, 1
        %s2136 = scalar_lea.vmem [#allocation22], %s2135
        // Predicated region
        $region145: #{tpu_custom_call.1} parent=91 // pred_check
          %p2137 = pneg %p523
        $region146: #{tpu_custom_call.1} parent=91 // pred_check_branch
          %2139 = sbr.rel (%p2137) target = $region148
        $region147: #{tpu_custom_call.1} parent=91 // pred_region
          %2141 = vsyncadd %s2124, 0
          %s2142 = smul.addr %s49, 8
          %s2143 = scalar_lea.hbm %s18, %s2142
          %s2145 = sshll.u32 %s2127, 4
          %s2146 = int_to_ptr.vmem [resolvable:$true] %s2145
          %s2147 = sshll.u32 %s2143, 4
          %s2148 = int_to_ptr.hbm [resolvable:$true] %s2147
          %2150 = dma.vmem_to_hbm [thread:$0]  %s2146, 128, %s2148, %s2124
        $region148: #{tpu_custom_call.1} parent=91 // pred_fallthru
          _
        // Predicated region
        $region149: #{tpu_custom_call.1} parent=91 // pred_check
          %p2151 = pneg %p551
        $region150: #{tpu_custom_call.1} parent=91 // pred_check_branch
          %2153 = sbr.rel (%p2151) target = $region152
        $region151: #{tpu_custom_call.1} parent=91 // pred_region
          %2155 = vsyncadd %s2129, 0
          %s2156 = smul.addr %s50, 2
          %s2157 = sadd.s32 %s49, %s2156
          %s2158 = smul.addr %s2157, 8
          %s2159 = scalar_lea.hbm %s19, %s2158
          %s2161 = sshll.u32 %s2132, 4
          %s2162 = int_to_ptr.vmem [resolvable:$true] %s2161
          %s2163 = sshll.u32 %s2159, 4
          %s2164 = int_to_ptr.hbm [resolvable:$true] %s2163
          %2166 = dma.vmem_to_hbm [thread:$0]  %s2162, 128, %s2164, %s2129
        $region152: #{tpu_custom_call.1} parent=91 // pred_fallthru
          _
        // Predicated region
        $region153: #{tpu_custom_call.1} parent=91 // pred_check
          %p2167 = pneg %p577
        $region154: #{tpu_custom_call.1} parent=91 // pred_check_branch
          %2169 = sbr.rel (%p2167) target = $region156
        $region155: #{tpu_custom_call.1} parent=91 // pred_region
          %2171 = vsyncadd %s2134, 0
          %s2172 = scalar_lea.hbm %s20, %s49
          %s2174 = sshll.u32 %s2136, 4
          %s2175 = int_to_ptr.vmem [resolvable:$true] %s2174
          %s2176 = sshll.u32 %s2172, 4
          %s2177 = int_to_ptr.hbm [resolvable:$true] %s2176
          %2179 = dma.vmem_to_hbm [thread:$0]  %s2175, 16, %s2177, %s2134
        $region156: #{tpu_custom_call.1} parent=91 // pred_fallthru
          _
      $region92: #{tpu_custom_call.1} parent=5 // pred_fallthru
        _
      %p2180 = scmp.le.s32.totalorder 2, %s40
      // Predicated region
      $region157: #{tpu_custom_call.1} parent=5 // pred_check
        %p2181 = pneg %p2180
      $region158: #{tpu_custom_call.1} parent=5 // pred_check_branch
        %2183 = sbr.rel (%p2181) target = $region160
      $region159: #{tpu_custom_call.1} parent=5 // pred_region
        %s2184 = ssub.s32 %s40, 2
        // Predicated region
        $region161: #{tpu_custom_call.1} parent=159 // pred_check
          %p2185 = pneg %p529
        $region162: #{tpu_custom_call.1} parent=159 // pred_check_branch
          %2187 = sbr.rel (%p2185) target = $region164
        $region163: #{tpu_custom_call.1} parent=159 // pred_region
          %s2188 = sand.u32 %s514, 1
          %s2189 = scalar_lea.sflag [#allocation6], %s2188
          %s2190 = sand.u32 %s514, 1
          %s2191 = smul.addr %s2190, 8
          %s2192 = scalar_lea.vmem [#allocation19], %s2191
          %2194 = dma.done %s2189, 128
        $region164: #{tpu_custom_call.1} parent=159 // pred_fallthru
          _
        // Predicated region
        $region165: #{tpu_custom_call.1} parent=159 // pred_check
          %p2195 = pneg %p557
        $region166: #{tpu_custom_call.1} parent=159 // pred_check_branch
          %2197 = sbr.rel (%p2195) target = $region168
        $region167: #{tpu_custom_call.1} parent=159 // pred_region
          %s2198 = sand.u32 %s46, 1
          %s2199 = scalar_lea.sflag [#allocation21], %s2198
          %s2200 = sand.u32 %s542, 1
          %s2201 = smul.addr %s2200, 8
          %s2202 = scalar_lea.vmem [#allocation20], %s2201
          %2204 = dma.done %s2199, 128
        $region168: #{tpu_custom_call.1} parent=159 // pred_fallthru
          _
        // Predicated region
        $region169: #{tpu_custom_call.1} parent=159 // pred_check
          %p2205 = pneg %p583
        $region170: #{tpu_custom_call.1} parent=159 // pred_check_branch
          %2207 = sbr.rel (%p2205) target = $region172
        $region171: #{tpu_custom_call.1} parent=159 // pred_region
          %s2208 = sand.u32 %s46, 1
          %s2209 = scalar_lea.sflag [#allocation21], %s2208
          %s2210 = sand.u32 %s568, 1
          %s2211 = scalar_lea.vmem [#allocation22], %s2210
          %2213 = dma.done %s2209, 16
        $region172: #{tpu_custom_call.1} parent=159 // pred_fallthru
          _
      $region160: #{tpu_custom_call.1} parent=5 // pred_fallthru
        _
    $region6: #{tpu_custom_call.1} parent=1 // loop_footer
      %s44 = sadd.s32 1, %s40
    $region7: #{tpu_custom_call.1} parent=1 // loop_footer_branch
      %39 = sbr.rel target = $region3
    $region8: #{tpu_custom_call.1} parent=1 // loop_exit
      _
    %2214 = vsyncpa [#allocation5], 1
    %s2215 = scalar_lea.sflag [#allocation5], 1
    %2216 = vsyncpa %s2215, 1
    %2217 = vsyncpa [#allocation8], 1
    %s2218 = scalar_lea.sflag [#allocation8], 1
    %2219 = vsyncpa %s2218, 1
    %2220 = vsyncpa [#allocation11], 1
    %2221 = vsyncpa [#allocation6], 1
    %s2222 = scalar_lea.sflag [#allocation6], 1
    %2223 = vsyncpa %s2222, 1
    %2224 = vsyncpa [#allocation21], 1
    %s2225 = scalar_lea.sflag [#allocation21], 1
    %2226 = vsyncpa %s2225, 1

</llo_original>
